<compile_context>
chip_gen: v6e
topology: v6e:2x2x1
jax: 0.10.0
libtpu: 0.0.40
codegen_flags: <defaults>
</compile_context>

<pallas_src>
import jax
import jax.numpy as jnp
import numpy as np
from jax import lax
from jax.experimental import pallas as pl
from jax.experimental.pallas import tpu as pltpu

EPS = 1e-5
LANE = 128
X_TILE_TARGET_BYTES = 4 * 1024 * 1024   # ~4 MiB x-tiles (v7x-safe, amortizes step cost)


def _round_up(v, m):
    return (v + m - 1) // m * m


def _nearest_resize_nchw(m, out_hw):
    """F.interpolate(mode='nearest') equivalent for NCHW tensors.
    Plain-JAX gather glue that runs outside the kernel."""
    n, c, h, w = m.shape
    oh, ow = out_hw
    if (h, w) == (oh, ow):
        return m
    ridx = jnp.floor(jnp.arange(oh) * (h / oh)).astype(jnp.int32)
    cidx = jnp.floor(jnp.arange(ow) * (w / ow)).astype(jnp.int32)
    return m[:, :, ridx][:, :, :, cidx]


def _vmem_limit_bytes():
    """min(96 MiB, 3/4 of physical VMEM): ~96 MiB on v5e/v6e (128 MiB VMEM),
    ~48 MiB on v7x (64 MiB VMEM).  Conservative fallback if the query fails."""
    try:
        cap = pltpu.get_tpu_info().vmem_capacity_bytes
        return int(min(96 * 1024 * 1024, cap * 3 // 4))
    except Exception:
        return 48 * 1024 * 1024


def _legal_channel_tiles(c, sublane):
    # (8,128) BlockSpec rule: second-to-last block dim is a multiple of the
    # sublane count (8 for f32, 16 for bf16) OR equals the full array dim.
    return [t for t in range(1, c + 1)
            if c % t == 0 and (t % sublane == 0 or t == c)]


def _choose_tiles(c, hwp, *, itemsize, sublane, n):
    """Returns (channel_tile, hw_tile).  hw_tile is None for the fused
    single-pass path (whole spatial extent per tile); otherwise the wrapper
    uses the two-pass (moments + apply) path."""
    fits = [t for t in _legal_channel_tiles(c, sublane)
            if t * hwp * itemsize <= X_TILE_TARGET_BYTES]
    if fits:
        tc = max(fits)
        # v7x megacore: with a single batch make sure there are >= 2 grid
        # steps on a parallel axis so both TensorCores get work.
        if n == 1 and c // tc == 1:
            smaller = [t for t in fits if c // t >= 2]
            if smaller:
                tc = max(smaller)
        return tc, None
    # Large feature map: even the smallest legal channel tile over the whole
    # spatial extent exceeds the VMEM budget -> also tile HW (two-pass path).
    tc = min(_legal_channel_tiles(c, sublane))
    thw_cands = [d for d in range(LANE, hwp + 1, LANE)
                 if hwp % d == 0 and tc * d * itemsize <= X_TILE_TARGET_BYTES]
    thw = max(thw_cands) if thw_cands else LANE
    return tc, thw


# ----------------------------- in-kernel helpers -----------------------------

def _masked_moments_mxu(x, masks):
    """x: (TC, T) f32; masks: (2, T) binary f32 ([mask; refmask]).
    Masked first/second moments via the MXU (frees the VALU slot on v7x):
      sums[:, r]  = sum_t x * masks[r]
      sums2[:, r] = sum_t x^2 * masks[r]   (== sum((m*x)^2) for binary masks)
    num[r] = sum_t masks[r] via a cheap lane reduction."""
    dn = (((1,), (1,)), ((), ()))            # contract the lane (spatial) axis
    sums = lax.dot_general(x, masks, dn, precision=lax.Precision.HIGHEST,
                           preferred_element_type=jnp.float32)       # (TC, 2)
    sums2 = lax.dot_general(x * x, masks, dn, precision=lax.Precision.HIGHEST,
                            preferred_element_type=jnp.float32)      # (TC, 2)
    num = jnp.sum(masks, axis=-1, keepdims=True)                     # (2, 1)
    return sums, sums2, num


def _fold_affine(params, s_f, s2_f, num_f, s_b, s2_b, num_b):
    """Fold each region path to a per-channel affine: out = (x*A + B) * mask.
    params columns: [fg_gamma, fg_beta, bg_gamma, bg_beta]."""
    one_p_fg_g = 1.0 + params[:, 0:1]
    fg_b = params[:, 1:2]
    one_p_bg_g = 1.0 + params[:, 2:3]
    bg_b = params[:, 3:4]

    inv_nf = 1.0 / (num_f + EPS)             # tiny (TC,1) shapes, cost is nil
    inv_nb = 1.0 / (num_b + EPS)
    mu_f = s_f * inv_nf
    mu_b = s_b * inv_nb
    # Exact expansion of sum((mask*(x - mu))^2) for binary masks.  Note:
    # single-pass moments can lose precision if |mu| >> std (acceptable for
    # normalized activations; matches the reference within 1e-4).
    var_f = (s2_f - 2.0 * mu_f * s_f + mu_f * mu_f * num_f) * inv_nf
    var_b = (s2_b - 2.0 * mu_b * s_b + mu_b * mu_b * num_b) * inv_nb

    vpe_b = var_b + EPS
    std_b = jnp.sqrt(vpe_b)
    inv_std_b = lax.rsqrt(vpe_b)             # EUP rsqrt: no full-width divides
    inv_std_f = lax.rsqrt(var_f + EPS)

    a_b = inv_std_b * one_p_bg_g
    b_b = bg_b - mu_b * a_b
    scale_f = inv_std_f * std_b
    a_f = scale_f * one_p_fg_g
    b_f = (mu_b - mu_f * scale_f) * one_p_fg_g + fg_b
    return a_f, b_f, a_b, b_b


def _channel_params(params_ref, j, tc):
    """Slice the whole-kernel-resident (C, 4) params block for channel tile j."""
    if params_ref.shape[0] == tc:            # single channel tile -> whole array
        return params_ref[...]
    start = pl.multiple_of(j * tc, 8)        # tc is a multiple of 8 in this branch
    return params_ref[pl.ds(start, tc), :]


# --------------------------------- kernels -----------------------------------

def _rain_fused_kernel(x_ref, masks_ref, params_ref, o_ref):
    # x_ref: (1, TC, HWp); masks_ref: (1, 2, HWp) [mask; refmask];
    # params_ref: whole-kernel-resident (C, 4).
    tc = x_ref.shape[1]
    x = x_ref[0].astype(jnp.float32)
    masks = masks_ref[0]
    params = _channel_params(params_ref, pl.program_id(1), tc)

    sums, sums2, num = _masked_moments_mxu(x, masks)
    a_f, b_f, a_b, b_b = _fold_affine(
        params,
        sums[:, 0:1], sums2[:, 0:1], num[0:1, :],
        sums[:, 1:2], sums2[:, 1:2], num[1:2, :])

    m = masks[0:1, :]
    rm = masks[1:2, :]
    o_ref[0] = ((x * a_f + b_f) * m + (x * a_b + b_b) * rm).astype(o_ref.dtype)


def _rain_moments_kernel(x_ref, masks_ref, stats_ref):
    # Pass 1 of the large-HW path.  stats_ref: (1, TC, 8) resident across the
    # HW reduction axis (constant block index); columns are
    # [s_f, s_b, s2_f, s2_b, num_f, num_b, 0, 0].
    k = pl.program_id(2)

    @pl.when(k == 0)
    def _():
        stats_ref[...] = jnp.zeros_like(stats_ref)

    x = x_ref[0].astype(jnp.float32)
    masks = masks_ref[0]
    tc = x.shape[0]
    sums, sums2, num = _masked_moments_mxu(x, masks)
    partial = jnp.concatenate(
        [sums, sums2,
         jnp.broadcast_to(num[0:1, :], (tc, 1)),
         jnp.broadcast_to(num[1:2, :], (tc, 1)),
         jnp.zeros((tc, 2), jnp.float32)], axis=-1)               # (TC, 8)
    stats_ref[0] += partial


def _rain_apply_kernel(stats_ref, params_ref, x_ref, masks_ref, o_ref):
    # Pass 2 of the large-HW path.  Grid order is (N, HW-tile, C-tile) with
    # the channel axis innermost so the (2, THW) masks block (index (i,0,k))
    # is reused across channel tiles; stats (1, C, 8) and params (C, 4) are
    # batch/kernel resident and sliced in-kernel.
    tc = x_ref.shape[1]
    j = pl.program_id(2)
    x = x_ref[0].astype(jnp.float32)
    masks = masks_ref[0]
    params = _channel_params(params_ref, j, tc)
    if stats_ref.shape[1] == tc:
        stats = stats_ref[0]
    else:
        start = pl.multiple_of(j * tc, 8)
        stats = stats_ref[0, pl.ds(start, tc), :]

    a_f, b_f, a_b, b_b = _fold_affine(
        params,
        stats[:, 0:1], stats[:, 2:3], stats[:, 4:5],
        stats[:, 1:2], stats[:, 3:4], stats[:, 5:6])

    m = masks[0:1, :]
    rm = masks[1:2, :]
    o_ref[0] = ((x * a_f + b_f) * m + (x * a_b + b_b) * rm).astype(o_ref.dtype)


# --------------------------------- wrapper ------------------------------------

def rain_v3(x, mask, refmask, fg_gamma, fg_beta, bg_gamma, bg_beta,
            *, channel_tile=None, hw_tile=None):
    """x: (N, C, H, W); mask/refmask: (N, 1, h, w) binary; params: (C,)."""
    n, c, h, w = x.shape
    hw = h * w
    hwp = _round_up(hw, LANE)    # lane-dense blocks: full-width (unmasked) stores

    mask = _nearest_resize_nchw(mask, (h, w))
    refmask = _nearest_resize_nchw(refmask, (h, w))

    x3 = x.reshape(n, c, hw)                       # keep input dtype (bf16 stays bf16)
    masks = jnp.concatenate(
        [mask.reshape(n, 1, hw), refmask.reshape(n, 1, hw)],
        axis=1).astype(jnp.float32)                # (N, 2, HW)
    if hwp != hw:
        pad = ((0, 0), (0, 0), (0, hwp - hw))
        x3 = jnp.pad(x3, pad)                      # masks are 0 in the pad -> sums unchanged
        masks = jnp.pad(masks, pad)
    params = jnp.stack([fg_gamma, fg_beta, bg_gamma, bg_beta],
                       axis=-1).astype(jnp.float32)            # (C, 4)

    itemsize = x3.dtype.itemsize
    sublane = 8 if itemsize >= 4 else 16           # bf16 minimum tile is (16, 128)
    auto_tc, auto_thw = _choose_tiles(c, hwp, itemsize=itemsize,
                                      sublane=sublane, n=n)
    tc = channel_tile if channel_tile is not None else auto_tc
    thw = hw_tile if hw_tile is not None else auto_thw
    assert c % tc == 0 and (tc % sublane == 0 or tc == c)
    vmem_limit = _vmem_limit_bytes()

    if thw is None:
        # Fused single-pass path: whole spatial extent in one tile.
        out = pl.pallas_call(
            _rain_fused_kernel,
            out_shape=jax.ShapeDtypeStruct((n, c, hwp), x3.dtype),
            grid_spec=pltpu.PrefetchScalarGridSpec(
                num_scalar_prefetch=0,
                grid=(n, c // tc),
                in_specs=[
                    pl.BlockSpec((1, tc, hwp), lambda i, j: (i, j, 0)),
                    # NOTE: keep the grid order (N outer, C-tile inner) and
                    # this (i, 0, 0) index map exactly as-is: Pallas skips
                    # re-DMAing the (2, HWp) masks block while the block
                    # index is unchanged across consecutive inner steps.
                    pl.BlockSpec((1, 2, hwp), lambda i, j: (i, 0, 0)),
                    # Whole-kernel-resident params (constant block index),
                    # sliced by program_id inside the kernel -> one fetch.
                    pl.BlockSpec((c, 4), lambda i, j: (0, 0)),
                ],
                out_specs=pl.BlockSpec((1, tc, hwp), lambda i, j: (i, j, 0)),
            ),
            compiler_params=pltpu.CompilerParams(
                dimension_semantics=("parallel", "parallel"),
                vmem_limit_bytes=vmem_limit),
        )(x3, masks, params)
    else:
        # Two-pass path for large feature maps: HW is tiled too.
        assert hwp % thw == 0 and thw % LANE == 0
        stats = pl.pallas_call(
            _rain_moments_kernel,
            out_shape=jax.ShapeDtypeStruct((n, c, 8), jnp.float32),
            grid_spec=pltpu.PrefetchScalarGridSpec(
                num_scalar_prefetch=0,
                grid=(n, c // tc, hwp // thw),      # HW reduction axis last
                in_specs=[
                    pl.BlockSpec((1, tc, thw), lambda i, j, k: (i, j, k)),
                    pl.BlockSpec((1, 2, thw), lambda i, j, k: (i, 0, k)),
                ],
                out_specs=pl.BlockSpec((1, tc, 8), lambda i, j, k: (i, j, 0)),
            ),
            compiler_params=pltpu.CompilerParams(
                dimension_semantics=("parallel", "parallel", "arbitrary"),
                vmem_limit_bytes=vmem_limit),
        )(x3, masks)

        out = pl.pallas_call(
            _rain_apply_kernel,
            out_shape=jax.ShapeDtypeStruct((n, c, hwp), x3.dtype),
            grid_spec=pltpu.PrefetchScalarGridSpec(
                num_scalar_prefetch=0,
                grid=(n, hwp // thw, c // tc),      # C innermost: masks reused
                in_specs=[
                    pl.BlockSpec((1, c, 8), lambda i, k, j: (i, 0, 0)),
                    pl.BlockSpec((c, 4), lambda i, k, j: (0, 0)),
                    pl.BlockSpec((1, tc, thw), lambda i, k, j: (i, j, k)),
                    pl.BlockSpec((1, 2, thw), lambda i, k, j: (i, 0, k)),
                ],
                out_specs=pl.BlockSpec((1, tc, thw), lambda i, k, j: (i, j, k)),
            ),
            compiler_params=pltpu.CompilerParams(
                dimension_semantics=("parallel", "parallel", "parallel"),
                vmem_limit_bytes=vmem_limit),
        )(stats, params, x3, masks)

    if hwp != hw:
        out = out[:, :, :hw]
    return out.reshape(n, c, h, w)


# -------------------------------- reference ------------------------------------

def rain_v3_ref(x, mask, refmask, fg_gamma, fg_beta, bg_gamma, bg_beta):
    """Pure-JAX reference mirroring the PyTorch forward (NCHW)."""
    mask = _nearest_resize_nchw(mask, x.shape[2:])
    refmask = _nearest_resize_nchw(refmask, x.shape[2:])

    def mean_std(region, msk):
        s = jnp.sum(region, axis=(2, 3))
        num = jnp.sum(msk, axis=(2, 3))
        mu = (s / (num + EPS))[:, :, None, None]
        var = jnp.sum((region + (1 - msk) * mu - mu) ** 2, axis=(2, 3)) / (num + EPS)
        return mu, jnp.sqrt(var[:, :, None, None] + EPS)

    mean_back, std_back = mean_std(x * refmask, refmask)
    normalized = (x - mean_back) / std_back
    nb = (normalized * (1 + bg_gamma[None, :, None, None])
          + bg_beta[None, :, None, None]) * refmask
    mean_fore, std_fore = mean_std(x * mask, mask)
    normalized = (x - mean_fore) / std_fore * std_back + mean_back
    nf = (normalized * (1 + fg_gamma[None, :, None, None])
          + fg_beta[None, :, None, None]) * mask
    return nf + nb


if __name__ == "__main__":
    def run_case(seed, n, c, h, w, mask_hw=None, zero_params=True, **tile_kw):
        keys = jax.random.split(jax.random.fold_in(jax.random.PRNGKey(0), seed), 6)
        x = jax.random.normal(keys[0], (n, c, h, w), dtype=jnp.float32)
        mh, mw = mask_hw if mask_hw is not None else (h, w)
        mask = (jax.random.uniform(keys[1], (n, 1, mh, mw)) > 0.5).astype(jnp.float32)
        refmask = 1.0 - mask                          # binary, complementary regions
        if zero_params:                               # nn.Parameter(torch.zeros(...)) init
            fg_g = fg_b = bg_g = bg_b = jnp.zeros((c,), jnp.float32)
        else:
            fg_g = 0.1 * jax.random.normal(keys[2], (c,), jnp.float32)
            fg_b = 0.1 * jax.random.normal(keys[3], (c,), jnp.float32)
            bg_g = 0.1 * jax.random.normal(keys[4], (c,), jnp.float32)
            bg_b = 0.1 * jax.random.normal(keys[5], (c,), jnp.float32)
        out = rain_v3(x, mask, refmask, fg_g, fg_b, bg_g, bg_b, **tile_kw)
        jax.block_until_ready(out)
        ref = rain_v3_ref(x, mask, refmask, fg_g, fg_b, bg_g, bg_b)
        np.testing.assert_allclose(np.asarray(out), np.asarray(ref),
                                   rtol=1e-4, atol=1e-5)

    # Default module config: zero-initialized params, lane-aligned HW, fused path.
    run_case(0, 2, 4, 16, 16, zero_params=True)
    # Non-lane-aligned HW (exercises lane padding) + half-res masks (nearest resize).
    run_case(1, 2, 4, 12, 12, mask_hw=(6, 6), zero_params=False)
    # Multiple channel tiles (exercises in-kernel dynamic params slice), fused path.
    run_case(2, 2, 16, 16, 16, zero_params=False, channel_tile=8)
    # Two-pass (moments + apply) path used for large feature maps, forced small here.
    run_case(3, 1, 16, 16, 16, zero_params=False, channel_tile=8, hw_tile=128)

    print("KERNEL_OK")
</pallas_src>

<mosaic_0001>
module attributes {stable_mosaic.version = 11 : i64} {
  func.func @_rain_fused_kernel(%arg0: i32, %arg1: i32, %arg2: memref<1x4x256xf32, #tpu.memory_space<vmem>>, %arg3: memref<1x2x256xf32, #tpu.memory_space<vmem>>, %arg4: memref<4x4xf32, #tpu.memory_space<vmem>>, %arg5: memref<1x4x256xf32, #tpu.memory_space<vmem>>) attributes {dimension_semantics = [#tpu.dimension_semantics<parallel>, #tpu.dimension_semantics<parallel>], iteration_bounds = array<i64: 2, 1>, scalar_prefetch = 0 : i64, scratch_operands = 0 : i64, tpu.core_type = #tpu.core_type<tc>, window_params = [{transform_indices = @transform_0, window_bounds = array<i64: 1, 4, 256>}, {transform_indices = @transform_1, window_bounds = array<i64: 1, 2, 256>}, {pipeline_mode = #tpu.pipeline_mode<synchronous>, transform_indices = @transform_2, window_bounds = array<i64: 4, 4>}, {transform_indices = @transform_3, window_bounds = array<i64: 1, 4, 256>}]} {
    %c0 = arith.constant 0 : index
    %c0_0 = arith.constant 0 : index
    %c0_1 = arith.constant 0 : index
    %0 = vector.load %arg2[%c0, %c0_0, %c0_1] : memref<1x4x256xf32, #tpu.memory_space<vmem>>, vector<1x4x256xf32>
    %1 = vector.shape_cast %0 : vector<1x4x256xf32> to vector<4x256xf32>
    %c0_2 = arith.constant 0 : index
    %c0_3 = arith.constant 0 : index
    %c0_4 = arith.constant 0 : index
    %2 = vector.load %arg3[%c0_2, %c0_3, %c0_4] : memref<1x2x256xf32, #tpu.memory_space<vmem>>, vector<1x2x256xf32>
    %3 = vector.shape_cast %2 : vector<1x2x256xf32> to vector<2x256xf32>
    %c0_5 = arith.constant 0 : index
    %c0_6 = arith.constant 0 : index
    %4 = vector.load %arg4[%c0_5, %c0_6] : memref<4x4xf32, #tpu.memory_space<vmem>>, vector<4x4xf32>
    %cst = arith.constant dense<0.000000e+00> : vector<4x2xf32>
    %5 = tpu.matmul %1, %3, %cst {dimension_numbers = #tpu.dot_dimension_numbers<[1], [1], [0], [0], [0, 0, 1, 0], [], []>, precision = #tpu.contract_precision<fp32>} : vector<4x256xf32>, vector<2x256xf32>, vector<4x2xf32> -> vector<4x2xf32>
    %6 = arith.mulf %1, %1 : vector<4x256xf32>
    %cst_7 = arith.constant dense<0.000000e+00> : vector<4x2xf32>
    %7 = tpu.matmul %6, %3, %cst_7 {dimension_numbers = #tpu.dot_dimension_numbers<[1], [1], [0], [0], [0, 0, 1, 0], [], []>, precision = #tpu.contract_precision<fp32>} : vector<4x256xf32>, vector<2x256xf32>, vector<4x2xf32> -> vector<4x2xf32>
    %cst_8 = arith.constant dense<0.000000e+00> : vector<2xf32>
    %8 = vector.multi_reduction <add>, %3, %cst_8 [1] : vector<2x256xf32> to vector<2xf32>
    %9 = vector.shape_cast %8 : vector<2xf32> to vector<2x1xf32>
    %10 = vector.extract_strided_slice %5 {offsets = [0, 0], sizes = [4, 1], strides = [1, 1]} : vector<4x2xf32> to vector<4x1xf32>
    %11 = vector.extract_strided_slice %7 {offsets = [0, 0], sizes = [4, 1], strides = [1, 1]} : vector<4x2xf32> to vector<4x1xf32>
    %12 = vector.extract_strided_slice %9 {offsets = [0, 0], sizes = [1, 1], strides = [1, 1]} : vector<2x1xf32> to vector<1x1xf32>
    %13 = vector.extract_strided_slice %5 {offsets = [0, 1], sizes = [4, 1], strides = [1, 1]} : vector<4x2xf32> to vector<4x1xf32>
    %14 = vector.extract_strided_slice %7 {offsets = [0, 1], sizes = [4, 1], strides = [1, 1]} : vector<4x2xf32> to vector<4x1xf32>
    %15 = vector.extract_strided_slice %9 {offsets = [1, 0], sizes = [1, 1], strides = [1, 1]} : vector<2x1xf32> to vector<1x1xf32>
    %16 = vector.extract_strided_slice %4 {offsets = [0, 0], sizes = [4, 1], strides = [1, 1]} : vector<4x4xf32> to vector<4x1xf32>
    %cst_9 = arith.constant 1.000000e+00 : f32
    %17 = vector.broadcast %cst_9 : f32 to vector<4x1xf32>
    %18 = arith.addf %17, %16 : vector<4x1xf32>
    %19 = vector.extract_strided_slice %4 {offsets = [0, 1], sizes = [4, 1], strides = [1, 1]} : vector<4x4xf32> to vector<4x1xf32>
    %20 = vector.extract_strided_slice %4 {offsets = [0, 2], sizes = [4, 1], strides = [1, 1]} : vector<4x4xf32> to vector<4x1xf32>
    %cst_10 = arith.constant 1.000000e+00 : f32
    %21 = vector.broadcast %cst_10 : f32 to vector<4x1xf32>
    %22 = arith.addf %21, %20 : vector<4x1xf32>
    %23 = vector.extract_strided_slice %4 {offsets = [0, 3], sizes = [4, 1], strides = [1, 1]} : vector<4x4xf32> to vector<4x1xf32>
    %cst_11 = arith.constant 9.99999974E-6 : f32
    %24 = vector.broadcast %cst_11 : f32 to vector<1x1xf32>
    %25 = arith.addf %12, %24 : vector<1x1xf32>
    %cst_12 = arith.constant 1.000000e+00 : f32
    %26 = vector.broadcast %cst_12 : f32 to vector<1x1xf32>
    %27 = arith.divf %26, %25 : vector<1x1xf32>
    %cst_13 = arith.constant 9.99999974E-6 : f32
    %28 = vector.broadcast %cst_13 : f32 to vector<1x1xf32>
    %29 = arith.addf %15, %28 : vector<1x1xf32>
    %cst_14 = arith.constant 1.000000e+00 : f32
    %30 = vector.broadcast %cst_14 : f32 to vector<1x1xf32>
    %31 = arith.divf %30, %29 : vector<1x1xf32>
    %32 = vector.broadcast %27 : vector<1x1xf32> to vector<4x1xf32>
    %33 = arith.mulf %10, %32 : vector<4x1xf32>
    %34 = vector.broadcast %31 : vector<1x1xf32> to vector<4x1xf32>
    %35 = arith.mulf %13, %34 : vector<4x1xf32>
    %cst_15 = arith.constant 2.000000e+00 : f32
    %36 = vector.broadcast %cst_15 : f32 to vector<4x1xf32>
    %37 = arith.mulf %36, %33 : vector<4x1xf32>
    %38 = arith.mulf %37, %10 : vector<4x1xf32>
    %39 = arith.subf %11, %38 : vector<4x1xf32>
    %40 = arith.mulf %33, %33 : vector<4x1xf32>
    %41 = vector.broadcast %12 : vector<1x1xf32> to vector<4x1xf32>
    %42 = arith.mulf %40, %41 : vector<4x1xf32>
    %43 = arith.addf %39, %42 : vector<4x1xf32>
    %44 = vector.broadcast %27 : vector<1x1xf32> to vector<4x1xf32>
    %45 = arith.mulf %43, %44 : vector<4x1xf32>
    %cst_16 = arith.constant 2.000000e+00 : f32
    %46 = vector.broadcast %cst_16 : f32 to vector<4x1xf32>
    %47 = arith.mulf %46, %35 : vector<4x1xf32>
    %48 = arith.mulf %47, %13 : vector<4x1xf32>
    %49 = arith.subf %14, %48 : vector<4x1xf32>
    %50 = arith.mulf %35, %35 : vector<4x1xf32>
    %51 = vector.broadcast %15 : vector<1x1xf32> to vector<4x1xf32>
    %52 = arith.mulf %50, %51 : vector<4x1xf32>
    %53 = arith.addf %49, %52 : vector<4x1xf32>
    %54 = vector.broadcast %31 : vector<1x1xf32> to vector<4x1xf32>
    %55 = arith.mulf %53, %54 : vector<4x1xf32>
    %cst_17 = arith.constant 9.99999974E-6 : f32
    %56 = vector.broadcast %cst_17 : f32 to vector<4x1xf32>
    %57 = arith.addf %55, %56 : vector<4x1xf32>
    %58 = math.sqrt %57 : vector<4x1xf32>
    %59 = math.rsqrt %57 : vector<4x1xf32>
    %cst_18 = arith.constant 9.99999974E-6 : f32
    %60 = vector.broadcast %cst_18 : f32 to vector<4x1xf32>
    %61 = arith.addf %45, %60 : vector<4x1xf32>
    %62 = math.rsqrt %61 : vector<4x1xf32>
    %63 = arith.mulf %59, %22 : vector<4x1xf32>
    %64 = arith.mulf %35, %63 : vector<4x1xf32>
    %65 = arith.subf %23, %64 : vector<4x1xf32>
    %66 = arith.mulf %62, %58 : vector<4x1xf32>
    %67 = arith.mulf %66, %18 : vector<4x1xf32>
    %68 = arith.mulf %33, %66 : vector<4x1xf32>
    %69 = arith.subf %35, %68 : vector<4x1xf32>
    %70 = arith.mulf %69, %18 : vector<4x1xf32>
    %71 = arith.addf %70, %19 : vector<4x1xf32>
    %72 = vector.extract_strided_slice %3 {offsets = [0, 0], sizes = [1, 256], strides = [1, 1]} : vector<2x256xf32> to vector<1x256xf32>
    %73 = vector.extract_strided_slice %3 {offsets = [1, 0], sizes = [1, 256], strides = [1, 1]} : vector<2x256xf32> to vector<1x256xf32>
    %74 = vector.broadcast %67 : vector<4x1xf32> to vector<4x256xf32>
    %75 = arith.mulf %1, %74 : vector<4x256xf32>
    %76 = vector.broadcast %71 : vector<4x1xf32> to vector<4x256xf32>
    %77 = arith.addf %75, %76 : vector<4x256xf32>
    %78 = vector.broadcast %72 : vector<1x256xf32> to vector<4x256xf32>
    %79 = arith.mulf %77, %78 : vector<4x256xf32>
    %80 = vector.broadcast %63 : vector<4x1xf32> to vector<4x256xf32>
    %81 = arith.mulf %1, %80 : vector<4x256xf32>
    %82 = vector.broadcast %65 : vector<4x1xf32> to vector<4x256xf32>
    %83 = arith.addf %81, %82 : vector<4x256xf32>
    %84 = vector.broadcast %73 : vector<1x256xf32> to vector<4x256xf32>
    %85 = arith.mulf %83, %84 : vector<4x256xf32>
    %86 = arith.addf %79, %85 : vector<4x256xf32>
    %c0_19 = arith.constant 0 : index
    %c0_20 = arith.constant 0 : index
    %c0_21 = arith.constant 0 : index
    %87 = vector.load %arg5[%c0_19, %c0_20, %c0_21] : memref<1x4x256xf32, #tpu.memory_space<vmem>>, vector<1x4x256xf32>
    %88 = vector.shape_cast %87 : vector<1x4x256xf32> to vector<4x256xf32>
    %89 = vector.shape_cast %86 : vector<4x256xf32> to vector<1x4x256xf32>
    tpu.vector_store %arg5[%c0_19, %c0_20, %c0_21], %89 {strides = array<i32>} : memref<1x4x256xf32, #tpu.memory_space<vmem>>, vector<1x4x256xf32>,
    return
  }
  func.func @transform_0(%arg0: i32, %arg1: i32) -> (i32, i32, i32) {
    %c0_i32 = arith.constant 0 : i32
    %c0_i32_0 = arith.constant 0 : i32
    return %arg0, %arg1, %c0_i32 : i32, i32, i32
  }
  func.func @transform_1(%arg0: i32, %arg1: i32) -> (i32, i32, i32) {
    %c0_i32 = arith.constant 0 : i32
    %c0_i32_0 = arith.constant 0 : i32
    %c0_i32_1 = arith.constant 0 : i32
    return %arg0, %c0_i32, %c0_i32_0 : i32, i32, i32
  }
  func.func @transform_2(%arg0: i32, %arg1: i32) -> (i32, i32) {
    %c0_i32 = arith.constant 0 : i32
    %c0_i32_0 = arith.constant 0 : i32
    %c0_i32_1 = arith.constant 0 : i32
    return %c0_i32, %c0_i32_0 : i32, i32
  }
  func.func @transform_3(%arg0: i32, %arg1: i32) -> (i32, i32, i32) {
    %c0_i32 = arith.constant 0 : i32
    %c0_i32_0 = arith.constant 0 : i32
    return %arg0, %arg1, %c0_i32 : i32, i32, i32
  }
}

</mosaic_0001>

<llo_original>
// kernel: tpu_custom_call.1
$region0: #{tpu_custom_call.1}
  #allocation0 [shape = 'u32[]', space=smem, size = 0x4, offset = 0x4, fixed_abs, tag = 'smem constant byte address 0x4 - core index']
  #allocation1 [shape = 'u32[144,128]{1,0:T(1,128)}', space=vmem, size = 0x12000, scoped, tag = 'internal scratch']
  %s0 = inlined_call_operand.hbm [shape: f32[2,4,256], index: 0, kind: input, shape index: {}]
  %s1 = inlined_call_operand.hbm [shape: f32[2,2,256], index: 1, kind: input, shape index: {}]
  %s2 = inlined_call_operand.hbm [shape: f32[4,4], index: 2, kind: input, shape index: {}]
  %s3 = inlined_call_operand.hbm [shape: f32[2,4,256], index: 3, kind: output, shape index: {}]
  %s4 = sld [smem:[#allocation0]]
  $region57: #{tpu_custom_call.1} parent=0
    _
  %s6 = ssub.s32 1, %s4
  %s7 = scalar_select 0, %s6, %s4
  $region1: #{tpu_custom_call.1} parent=0
    #allocation2 [shape = 'u8[8192]{0}', space=vmem, size = 0x2000, scoped, tag = 'input window, operand 0']
    #allocation3 [shape = 's32[2]{0}', space=sflag, size = 0x8, scoped, tag = 'scoped memory for tpu_custom_call.1']
    #allocation4 [shape = 's32[2]{0}', space=sflag, size = 0x8, scoped, tag = 'scoped memory for tpu_custom_call.1']
    #allocation5 [shape = 'u8[4096]{0}', space=vmem, size = 0x1000, scoped, tag = 'input window, operand 1']
    #allocation6 [shape = 's32[2]{0}', space=sflag, size = 0x8, scoped, tag = 'scoped memory for tpu_custom_call.1']
    #allocation7 [shape = 'u8[2048]{0}', space=vmem, size = 0x800, scoped, tag = 'input window, operand 2, single buffered']
    #allocation8 [shape = 'u8[8192]{0}', space=vmem, size = 0x2000, scoped, tag = 'output window, operand 0']
    %8 = vsyncpa [#allocation3], 0
    %s9 = scalar_lea.sflag [#allocation3], 1
    %10 = vsyncpa %s9, 0
    %11 = vsyncpa [#allocation6], 0
    %s12 = scalar_lea.sflag [#allocation6], 1
    %13 = vsyncpa %s12, 0
    %14 = vsyncpa [#allocation4], 0
    %s15 = scalar_lea.sflag [#allocation4], 1
    %16 = vsyncpa %s15, 0
    loop: start=0, step=1, limit=4
    $region2: #{tpu_custom_call.1} parent=1 // loop_pre_header
      _
    $region3: #{tpu_custom_call.1} parent=1 // loop_header
      %s18 = sphi 0, %s22
      %p19 = scmp.ge.s32.totalorder %s18, 4
      %s25 = sphi 0, %s37
      %s26 = sphi 0, %s33
      %s27 = sphi 0, %s25
      %s28 = sphi 0, %s26
      %s29 = sphi 0, %s27
      %s30 = sphi 0, %s28
      %s42 = sphi 0, %s44
      %s45 = sphi 0, %s42
      %s46 = sphi 0, %s45
      %s62 = sphi 0, %s46
      %s68 = sphi 0, %s70
      %s71 = sphi 0, %s68
      %s72 = sphi 0, %s71
      %s88 = sphi 0, %s72
      %s92 = sphi 0, %s92
      %s94 = sphi 0, %s92
      %s95 = sphi 0, %s94
      %s109 = sphi 0, %s95
      %s117 = sphi 0, %s119
      %s120 = sphi 0, %s117
      %s121 = sphi 0, %s120
      %s137 = sphi 0, %s121
    $region4: #{tpu_custom_call.1} parent=1 // loop_header_branch
      %21 = sbr.rel (%p19) target = $region8
    $region5: #{tpu_custom_call.1} parent=1 // loop_body
      %s23 = ssub.s32 %s18, 1
      %s24 = ssub.s32 %s18, 2
      %s31 = sadd.s32 1, %s26
      %p32 = scmp.ge.s32.totalorder %s31, 1
      %s33 = scalar_select %p32, 0, %s31
      %s34 = sadd.s32 1, %s25
      %s35 = scalar_select %p32, %s34, %s25
      %p36 = scmp.ge.s32.totalorder %s35, 2
      %s37 = scalar_select %p36, 0, %s35
      %s38 = ssub.s32 %s25, %s37
      %s39 = ssub.s32 %s26, %s33
      %s40 = sor.u32 %s38, %s39
      %p41 = scmp.eq.s32.totalorder %s40, 0
      %s43 = sadd.s32 %s42, 1
      %s44 = scalar_select %p41, %s42, %s43
      %p47 = pneg %p41
      %p48 = scmp.eq.s32.totalorder %s18, 1
      %p49 = por %p47, %p48
      %p50 = scmp.ne.s32.totalorder %s42, %s45
      %p51 = scmp.eq.s32.totalorder %s18, 0
      %p52 = por %p50, %p51
      %p53 = scmp.ne.s32.totalorder %s42, %s45
      %p54 = scmp.eq.s32.totalorder %s23, 1
      %p55 = por %p53, %p54
      %p56 = scmp.ne.s32.totalorder %s45, %s46
      %p57 = scmp.eq.s32.totalorder %s23, 0
      %p58 = por %p56, %p57
      %p59 = scmp.ne.s32.totalorder %s45, %s46
      %p60 = scmp.eq.s32.totalorder %s24, 1
      %p61 = por %p59, %p60
      %p63 = scmp.ne.s32.totalorder %s46, %s62
      %p64 = scmp.eq.s32.totalorder %s24, 0
      %p65 = por %p63, %p64
      %s66 = ssub.s32 %s25, %s37
      %p67 = scmp.eq.s32.totalorder %s66, 0
      %s69 = sadd.s32 %s68, 1
      %s70 = scalar_select %p67, %s68, %s69
      %p73 = pneg %p67
      %p74 = scmp.eq.s32.totalorder %s18, 1
      %p75 = por %p73, %p74
      %p76 = scmp.ne.s32.totalorder %s68, %s71
      %p77 = scmp.eq.s32.totalorder %s18, 0
      %p78 = por %p76, %p77
      %p79 = scmp.ne.s32.totalorder %s68, %s71
      %p80 = scmp.eq.s32.totalorder %s23, 1
      %p81 = por %p79, %p80
      %p82 = scmp.ne.s32.totalorder %s71, %s72
      %p83 = scmp.eq.s32.totalorder %s23, 0
      %p84 = por %p82, %p83
      %p85 = scmp.ne.s32.totalorder %s71, %s72
      %p86 = scmp.eq.s32.totalorder %s24, 1
      %p87 = por %p85, %p86
      %p89 = scmp.ne.s32.totalorder %s72, %s88
      %p90 = scmp.eq.s32.totalorder %s24, 0
      %p91 = por %p89, %p90
      %s93 = sadd.s32 %s92, 1
      %p96 = scmp.eq.s32.totalorder %s18, 1
      %p97 = scmp.ne.s32.totalorder %s92, %s94
      %p98 = scmp.eq.s32.totalorder %s18, 0
      %p99 = por %p97, %p98
      %p100 = scmp.ne.s32.totalorder %s92, %s94
      %p101 = scmp.eq.s32.totalorder %s23, 1
      %p102 = por %p100, %p101
      %p103 = scmp.ne.s32.totalorder %s94, %s95
      %p104 = scmp.eq.s32.totalorder %s23, 0
      %p105 = por %p103, %p104
      %p106 = scmp.ne.s32.totalorder %s94, %s95
      %p107 = scmp.eq.s32.totalorder %s24, 1
      %p108 = por %p106, %p107
      %p110 = scmp.ne.s32.totalorder %s95, %s109
      %p111 = scmp.eq.s32.totalorder %s24, 0
      %p112 = por %p110, %p111
      %s113 = ssub.s32 %s25, %s37
      %s114 = ssub.s32 %s26, %s33
      %s115 = sor.u32 %s113, %s114
      %p116 = scmp.eq.s32.totalorder %s115, 0
      %s118 = sadd.s32 %s117, 1
      %s119 = scalar_select %p116, %s117, %s118
      %p122 = pneg %p116
      %p123 = scmp.eq.s32.totalorder %s18, 1
      %p124 = por %p122, %p123
      %p125 = scmp.ne.s32.totalorder %s117, %s120
      %p126 = scmp.eq.s32.totalorder %s18, 0
      %p127 = por %p125, %p126
      %p128 = scmp.ne.s32.totalorder %s117, %s120
      %p129 = scmp.eq.s32.totalorder %s23, 1
      %p130 = por %p128, %p129
      %p131 = scmp.ne.s32.totalorder %s120, %s121
      %p132 = scmp.eq.s32.totalorder %s23, 0
      %p133 = por %p131, %p132
      %p134 = scmp.ne.s32.totalorder %s120, %s121
      %p135 = scmp.eq.s32.totalorder %s24, 1
      %p136 = por %p134, %p135
      %p138 = scmp.ne.s32.totalorder %s121, %s137
      %p139 = scmp.eq.s32.totalorder %s24, 0
      %p140 = por %p138, %p139
      %p141 = scmp.le.s32.totalorder 1, %s18
      %p142 = scmp.lt.s32.totalorder %s18, 3
      %p143 = pnand %p141, %p142
      %p144 = pneg %p143
      // Predicated region
      $region9: #{tpu_custom_call.1} parent=5 // pred_check
        _
      $region10: #{tpu_custom_call.1} parent=5 // pred_check_branch
        %146 = sbr.rel (%p143) target = $region12
      $region11: #{tpu_custom_call.1} parent=5 // pred_region
        %s147 = ssub.s32 %s18, 1
        // Predicated region
        $region13: #{tpu_custom_call.1} parent=11 // pred_check
          %p148 = pneg %p105
        $region14: #{tpu_custom_call.1} parent=11 // pred_check_branch
          %150 = sbr.rel (%p148) target = $region16
        $region15: #{tpu_custom_call.1} parent=11 // pred_region
          %s152 = ssub.s32 64, 64
          %153 = vsyncadd [#allocation6], %s152
          %s155 = sshll.u32 [#allocation7], 4
          %s156 = int_to_ptr.vmem [resolvable:$true] %s155
          %158 = dma.hbm_to_vmem [thread:$0]  %s2, 64, %s156, [#allocation6]
        $region16: #{tpu_custom_call.1} parent=11 // pred_fallthru
          _
      $region12: #{tpu_custom_call.1} parent=5 // pred_fallthru
        _
      %p159 = scmp.lt.s32.totalorder %s18, 2
      // Predicated region
      $region17: #{tpu_custom_call.1} parent=5 // pred_check
        %p160 = pneg %p159
      $region18: #{tpu_custom_call.1} parent=5 // pred_check_branch
        %162 = sbr.rel (%p160) target = $region20
      $region19: #{tpu_custom_call.1} parent=5 // pred_region
        // Predicated region
        $region21: #{tpu_custom_call.1} parent=19 // pred_check
          %p163 = pneg %p52
        $region22: #{tpu_custom_call.1} parent=19 // pred_check_branch
          %165 = sbr.rel (%p163) target = $region24
        $region23: #{tpu_custom_call.1} parent=19 // pred_region
          %s166 = sand.u32 %s42, 1
          %s167 = scalar_lea.sflag [#allocation3], %s166
          %s168 = sand.u32 %s42, 1
          %s169 = smul.addr %s168, 8
          %s170 = scalar_lea.vmem [#allocation2], %s169
          %s172 = ssub.s32 128, 128
          %173 = vsyncadd %s167, %s172
          %s174 = smul.addr %s26, 2
          %s175 = smul.addr %s25, 2
          %s176 = sadd.s32 %s174, %s175
          %s177 = smul.addr %s176, 64
          %s178 = scalar_lea.hbm %s0, %s177
          %s180 = sshll.u32 %s170, 4
          %s181 = int_to_ptr.vmem [resolvable:$true] %s180
          %183 = dma.hbm_to_vmem [thread:$0]  %s178, 128, %s181, %s167
        $region24: #{tpu_custom_call.1} parent=19 // pred_fallthru
          _
        // Predicated region
        $region25: #{tpu_custom_call.1} parent=19 // pred_check
          %p184 = pneg %p78
        $region26: #{tpu_custom_call.1} parent=19 // pred_check_branch
          %186 = sbr.rel (%p184) target = $region28
        $region27: #{tpu_custom_call.1} parent=19 // pred_region
          %s187 = sand.u32 %s18, 1
          %s188 = scalar_lea.sflag [#allocation6], %s187
          %s189 = sand.u32 %s68, 1
          %s190 = smul.addr %s189, 4
          %s191 = scalar_lea.vmem [#allocation5], %s190
          %s193 = ssub.s32 64, 64
          %194 = vsyncadd %s188, %s193
          %s195 = smul.addr %s25, 2
          %s196 = smul.addr %s195, 32
          %s197 = scalar_lea.hbm %s1, %s196
          %s199 = sshll.u32 %s191, 4
          %s200 = int_to_ptr.vmem [resolvable:$true] %s199
          %202 = dma.hbm_to_vmem [thread:$0]  %s197, 64, %s200, %s188
        $region28: #{tpu_custom_call.1} parent=19 // pred_fallthru
          _
      $region20: #{tpu_custom_call.1} parent=5 // pred_fallthru
        _
      %p203 = scmp.le.s32.totalorder 1, %s18
      %p204 = scmp.lt.s32.totalorder %s18, 3
      %p205 = pnand %p203, %p204
      %p206 = pneg %p205
      // Predicated region
      $region29: #{tpu_custom_call.1} parent=5 // pred_check
        _
      $region30: #{tpu_custom_call.1} parent=5 // pred_check_branch
        %208 = sbr.rel (%p205) target = $region32
      $region31: #{tpu_custom_call.1} parent=5 // pred_region
        %s209 = ssub.s32 %s18, 1
        %s210 = sand.u32 %s45, 1
        %s211 = scalar_lea.sflag [#allocation3], %s210
        %s212 = sand.u32 %s45, 1
        %s213 = smul.addr %s212, 8
        %s214 = scalar_lea.vmem [#allocation2], %s213
        // Predicated region
        $region33: #{tpu_custom_call.1} parent=31 // pred_check
          %p215 = pneg %p58
        $region34: #{tpu_custom_call.1} parent=31 // pred_check_branch
          %217 = sbr.rel (%p215) target = $region36
        $region35: #{tpu_custom_call.1} parent=31 // pred_region
          %218 = dma.done %s211, 128
        $region36: #{tpu_custom_call.1} parent=31 // pred_fallthru
          _
        %s219 = sand.u32 %s23, 1
        %s220 = scalar_lea.sflag [#allocation6], %s219
        %s221 = sand.u32 %s71, 1
        %s222 = smul.addr %s221, 4
        %s223 = scalar_lea.vmem [#allocation5], %s222
        // Predicated region
        $region37: #{tpu_custom_call.1} parent=31 // pred_check
          %p224 = pneg %p84
        $region38: #{tpu_custom_call.1} parent=31 // pred_check_branch
          %226 = sbr.rel (%p224) target = $region40
        $region39: #{tpu_custom_call.1} parent=31 // pred_region
          %227 = dma.done %s220, 64
        $region40: #{tpu_custom_call.1} parent=31 // pred_fallthru
          _
        // Predicated region
        $region41: #{tpu_custom_call.1} parent=31 // pred_check
          %p228 = pneg %p105
        $region42: #{tpu_custom_call.1} parent=31 // pred_check_branch
          %230 = sbr.rel (%p228) target = $region44
        $region43: #{tpu_custom_call.1} parent=31 // pred_region
          %231 = dma.done [#allocation6], 64
        $region44: #{tpu_custom_call.1} parent=31 // pred_fallthru
          _
        %s232 = sand.u32 %s45, 1
        %s233 = scalar_lea.sflag [#allocation3], %s232
        %s234 = sand.u32 %s45, 1
        %s235 = smul.addr %s234, 8
        %s236 = scalar_lea.vmem [#allocation2], %s235
        %p237 = pneg %p58
        %p238 = pneg %p55
        %s239 = sand.u32 %s23, 1
        %s240 = scalar_lea.sflag [#allocation6], %s239
        %s241 = sand.u32 %s71, 1
        %s242 = smul.addr %s241, 4
        %s243 = scalar_lea.vmem [#allocation5], %s242
        %p244 = pneg %p84
        %p245 = pneg %p81
        %p246 = pneg %p105
        %p247 = pneg %p102
        %p248 = pneg %p133
        %p249 = pneg %p130
        %s250 = sand.u32 %s120, 1
        %s251 = scalar_lea.sflag [#allocation4], %s250
        %s252 = sand.u32 %s120, 1
        %s253 = smul.addr %s252, 8
        %s254 = scalar_lea.vmem [#allocation8], %s253
        %v255 = vld [vmem:[%s214] sm:$0xff]
        %v256 = vld [vmem:[%s223] sm:$0xf]
        %v257 = vld [vmem:[#allocation7] sm:$0xf]
        %v259 = vcombine.high %v255, %v255
        %v263 = vunpack.c.l.s4 1983009808
        %v264 = vunpack.c.0.s8 %v263
        %v265 = vlaneseq
        %v266 = vshrl.u32 %v265, 7
        %v267 = vsub.s32 %v264, %v266
        %v268 = vrot.slane %v256, %v267
        %v269 = vcombine.high %v268, %v268
        %272 = vmatprep.subr.mxu0 0.0
        %273 = vmatpush1.xpose.msra.mxu0 0.0
        %274 = vmatprep.subr.mxu0 0.0
        %275 = vmatpush1.xpose.msra.mxu0 0.0
        %276 = vmatprep.subr.mxu0 0.0
        %277 = vmatpush1.xpose.msra.mxu0 0.0
        %278 = vmatprep.subr.mxu0 0.0
        %279 = vmatpush1.xpose.msra.mxu0 0.0
        %280 = vmatprep.subr.mxu0 0.0
        %281 = vmatpush1.xpose.msra.mxu0 0.0
        %282 = vmatprep.subr.mxu0 0.0
        %283 = vmatpush1.xpose.msra.mxu0 0.0
        %284 = vmatprep.subr.mxu0 0.0
        %285 = vmatpush1.xpose.msra.mxu0 0.0
        %286 = vmatprep.subr.mxu0 0.0
        %287 = vmatpush1.xpose.msra.mxu0 0.0
        %288 = vmatprep.subr.mxu0 0.0
        %289 = vmatpush1.xpose.msra.mxu0 0.0
        %290 = vmatprep.subr.mxu0 0.0
        %291 = vmatpush1.xpose.msra.mxu0 0.0
        %292 = vmatprep.subr.mxu0 0.0
        %293 = vmatpush1.xpose.msra.mxu0 0.0
        %294 = vmatprep.subr.mxu0 0.0
        %295 = vmatpush1.xpose.msra.mxu0 0.0
        %296 = vmatprep.subr.mxu0 0.0
        %297 = vmatpush1.xpose.msra.mxu0 0.0
        %298 = vmatprep.subr.mxu0 0.0
        %299 = vmatpush1.xpose.msra.mxu0 0.0
        %300 = vmatprep.subr.mxu0 0.0
        %301 = vmatpush1.xpose.msra.mxu0 0.0
        %v302 = vand.u32 %v269, 4294901760
        %303 = vmatprep.subr.mxu0 %v302
        %v304 = vand.u32 %v268, 4294901760
        %305 = vmatpush1.xpose.msra.mxu0 %v304
        %306 = vmatprep.subr.mxu0 0.0
        %307 = vmatpush2.xpose.msra.mxu0 0.0
        %308 = vmatprep.subr.mxu0 0.0
        %309 = vmatpush2.xpose.msra.mxu0 0.0
        %310 = vmatprep.subr.mxu0 0.0
        %311 = vmatpush2.xpose.msra.mxu0 0.0
        %312 = vmatprep.subr.mxu0 0.0
        %313 = vmatpush2.xpose.msra.mxu0 0.0
        %314 = vmatprep.subr.mxu0 0.0
        %315 = vmatpush2.xpose.msra.mxu0 0.0
        %316 = vmatprep.subr.mxu0 0.0
        %317 = vmatpush2.xpose.msra.mxu0 0.0
        %318 = vmatprep.subr.mxu0 0.0
        %319 = vmatpush2.xpose.msra.mxu0 0.0
        %320 = vmatprep.subr.mxu0 0.0
        %321 = vmatpush2.xpose.msra.mxu0 0.0
        %322 = vmatprep.subr.mxu0 0.0
        %323 = vmatpush2.xpose.msra.mxu0 0.0
        %324 = vmatprep.subr.mxu0 0.0
        %325 = vmatpush2.xpose.msra.mxu0 0.0
        %326 = vmatprep.subr.mxu0 0.0
        %327 = vmatpush2.xpose.msra.mxu0 0.0
        %328 = vmatprep.subr.mxu0 0.0
        %329 = vmatpush2.xpose.msra.mxu0 0.0
        %330 = vmatprep.subr.mxu0 0.0
        %331 = vmatpush2.xpose.msra.mxu0 0.0
        %332 = vmatprep.subr.mxu0 0.0
        %333 = vmatpush2.xpose.msra.mxu0 0.0
        %334 = vmatprep.subr.mxu0 0.0
        %335 = vmatpush2.xpose.msra.mxu0 0.0
        %336 = vmatprep.subr.mxu0 0.0
        %337 = vmatpush2.xpose.msra.mxu0 0.0
        %v338 = vand.u32 %v259, 4294901760
        %v339 = vsub.f32 %v259, %v338
        %v340 = vand.u32 %v339, 4294901760
        %v341 = vsub.f32 %v339, %v340
        %v342 = vand.u32 %v341, 4294901760
        %343 = vmatprep.mubr.f32.mxu0 %v342
        %v344 = vand.u32 %v255, 4294901760
        %v345 = vsub.f32 %v255, %v344
        %v346 = vand.u32 %v345, 4294901760
        %v347 = vsub.f32 %v345, %v346
        %v348 = vand.u32 %v347, 4294901760
        %349 = vmatmul.mubr.f32.gmra.mxu0 %v348
        %v350 = vpop.f32.mrf.mxu0
        %v351 = vadd.f32 0.0, %v350
        %v352 = vpop.f32.mrf.mxu0
        %353 = vdwg.mxu0
        %354 = vmatprep.subr.mxu0 0.0
        %355 = vmatpush1.xpose.msra.mxu0 0.0
        %356 = vmatprep.subr.mxu0 0.0
        %357 = vmatpush1.xpose.msra.mxu0 0.0
        %358 = vmatprep.subr.mxu0 0.0
        %359 = vmatpush1.xpose.msra.mxu0 0.0
        %360 = vmatprep.subr.mxu0 0.0
        %361 = vmatpush1.xpose.msra.mxu0 0.0
        %362 = vmatprep.subr.mxu0 0.0
        %363 = vmatpush1.xpose.msra.mxu0 0.0
        %364 = vmatprep.subr.mxu0 0.0
        %365 = vmatpush1.xpose.msra.mxu0 0.0
        %366 = vmatprep.subr.mxu0 0.0
        %367 = vmatpush1.xpose.msra.mxu0 0.0
        %368 = vmatprep.subr.mxu0 0.0
        %369 = vmatpush1.xpose.msra.mxu0 0.0
        %370 = vmatprep.subr.mxu0 0.0
        %371 = vmatpush1.xpose.msra.mxu0 0.0
        %372 = vmatprep.subr.mxu0 0.0
        %373 = vmatpush1.xpose.msra.mxu0 0.0
        %374 = vmatprep.subr.mxu0 0.0
        %375 = vmatpush1.xpose.msra.mxu0 0.0
        %376 = vmatprep.subr.mxu0 0.0
        %377 = vmatpush1.xpose.msra.mxu0 0.0
        %378 = vmatprep.subr.mxu0 0.0
        %379 = vmatpush1.xpose.msra.mxu0 0.0
        %380 = vmatprep.subr.mxu0 0.0
        %381 = vmatpush1.xpose.msra.mxu0 0.0
        %382 = vmatprep.subr.mxu0 0.0
        %383 = vmatpush1.xpose.msra.mxu0 0.0
        %v384 = vand.u32 %v269, 4294901760
        %v385 = vsub.f32 %v269, %v384
        %v386 = vand.u32 %v385, 4294901760
        %v387 = vsub.f32 %v385, %v386
        %v388 = vand.u32 %v387, 4294901760
        %389 = vmatprep.subr.mxu0 %v388
        %v390 = vand.u32 %v268, 4294901760
        %v391 = vsub.f32 %v268, %v390
        %v392 = vand.u32 %v391, 4294901760
        %v393 = vsub.f32 %v391, %v392
        %v394 = vand.u32 %v393, 4294901760
        %395 = vmatpush1.xpose.msra.mxu0 %v394
        %396 = vmatprep.subr.mxu0 0.0
        %397 = vmatpush2.xpose.msra.mxu0 0.0
        %398 = vmatprep.subr.mxu0 0.0
        %399 = vmatpush2.xpose.msra.mxu0 0.0
        %400 = vmatprep.subr.mxu0 0.0
        %401 = vmatpush2.xpose.msra.mxu0 0.0
        %402 = vmatprep.subr.mxu0 0.0
        %403 = vmatpush2.xpose.msra.mxu0 0.0
        %404 = vmatprep.subr.mxu0 0.0
        %405 = vmatpush2.xpose.msra.mxu0 0.0
        %406 = vmatprep.subr.mxu0 0.0
        %407 = vmatpush2.xpose.msra.mxu0 0.0
        %408 = vmatprep.subr.mxu0 0.0
        %409 = vmatpush2.xpose.msra.mxu0 0.0
        %410 = vmatprep.subr.mxu0 0.0
        %411 = vmatpush2.xpose.msra.mxu0 0.0
        %412 = vmatprep.subr.mxu0 0.0
        %413 = vmatpush2.xpose.msra.mxu0 0.0
        %414 = vmatprep.subr.mxu0 0.0
        %415 = vmatpush2.xpose.msra.mxu0 0.0
        %416 = vmatprep.subr.mxu0 0.0
        %417 = vmatpush2.xpose.msra.mxu0 0.0
        %418 = vmatprep.subr.mxu0 0.0
        %419 = vmatpush2.xpose.msra.mxu0 0.0
        %420 = vmatprep.subr.mxu0 0.0
        %421 = vmatpush2.xpose.msra.mxu0 0.0
        %422 = vmatprep.subr.mxu0 0.0
        %423 = vmatpush2.xpose.msra.mxu0 0.0
        %424 = vmatprep.subr.mxu0 0.0
        %425 = vmatpush2.xpose.msra.mxu0 0.0
        %426 = vmatprep.subr.mxu0 0.0
        %427 = vmatpush2.xpose.msra.mxu0 0.0
        %v428 = vand.u32 %v259, 4294901760
        %429 = vmatprep.mubr.f32.mxu0 %v428
        %v430 = vand.u32 %v255, 4294901760
        %431 = vmatmul.mubr.f32.gmra.mxu0 %v430
        %v432 = vpop.f32.mrf.mxu0
        %v433 = vadd.f32 %v351, %v432
        %v434 = vpop.f32.mrf.mxu0
        %435 = vdwg.mxu0
        %436 = vmatprep.subr.mxu0 0.0
        %437 = vmatpush1.xpose.msra.mxu0 0.0
        %438 = vmatprep.subr.mxu0 0.0
        %439 = vmatpush1.xpose.msra.mxu0 0.0
        %440 = vmatprep.subr.mxu0 0.0
        %441 = vmatpush1.xpose.msra.mxu0 0.0
        %442 = vmatprep.subr.mxu0 0.0
        %443 = vmatpush1.xpose.msra.mxu0 0.0
        %444 = vmatprep.subr.mxu0 0.0
        %445 = vmatpush1.xpose.msra.mxu0 0.0
        %446 = vmatprep.subr.mxu0 0.0
        %447 = vmatpush1.xpose.msra.mxu0 0.0
        %448 = vmatprep.subr.mxu0 0.0
        %449 = vmatpush1.xpose.msra.mxu0 0.0
        %450 = vmatprep.subr.mxu0 0.0
        %451 = vmatpush1.xpose.msra.mxu0 0.0
        %452 = vmatprep.subr.mxu0 0.0
        %453 = vmatpush1.xpose.msra.mxu0 0.0
        %454 = vmatprep.subr.mxu0 0.0
        %455 = vmatpush1.xpose.msra.mxu0 0.0
        %456 = vmatprep.subr.mxu0 0.0
        %457 = vmatpush1.xpose.msra.mxu0 0.0
        %458 = vmatprep.subr.mxu0 0.0
        %459 = vmatpush1.xpose.msra.mxu0 0.0
        %460 = vmatprep.subr.mxu0 0.0
        %461 = vmatpush1.xpose.msra.mxu0 0.0
        %462 = vmatprep.subr.mxu0 0.0
        %463 = vmatpush1.xpose.msra.mxu0 0.0
        %464 = vmatprep.subr.mxu0 0.0
        %465 = vmatpush1.xpose.msra.mxu0 0.0
        %v466 = vand.u32 %v269, 4294901760
        %v467 = vsub.f32 %v269, %v466
        %468 = vmatprep.subr.mxu0 %v467
        %v469 = vand.u32 %v268, 4294901760
        %v470 = vsub.f32 %v268, %v469
        %471 = vmatpush1.xpose.msra.mxu0 %v470
        %472 = vmatprep.subr.mxu0 0.0
        %473 = vmatpush2.xpose.msra.mxu0 0.0
        %474 = vmatprep.subr.mxu0 0.0
        %475 = vmatpush2.xpose.msra.mxu0 0.0
        %476 = vmatprep.subr.mxu0 0.0
        %477 = vmatpush2.xpose.msra.mxu0 0.0
        %478 = vmatprep.subr.mxu0 0.0
        %479 = vmatpush2.xpose.msra.mxu0 0.0
        %480 = vmatprep.subr.mxu0 0.0
        %481 = vmatpush2.xpose.msra.mxu0 0.0
        %482 = vmatprep.subr.mxu0 0.0
        %483 = vmatpush2.xpose.msra.mxu0 0.0
        %484 = vmatprep.subr.mxu0 0.0
        %485 = vmatpush2.xpose.msra.mxu0 0.0
        %486 = vmatprep.subr.mxu0 0.0
        %487 = vmatpush2.xpose.msra.mxu0 0.0
        %488 = vmatprep.subr.mxu0 0.0
        %489 = vmatpush2.xpose.msra.mxu0 0.0
        %490 = vmatprep.subr.mxu0 0.0
        %491 = vmatpush2.xpose.msra.mxu0 0.0
        %492 = vmatprep.subr.mxu0 0.0
        %493 = vmatpush2.xpose.msra.mxu0 0.0
        %494 = vmatprep.subr.mxu0 0.0
        %495 = vmatpush2.xpose.msra.mxu0 0.0
        %496 = vmatprep.subr.mxu0 0.0
        %497 = vmatpush2.xpose.msra.mxu0 0.0
        %498 = vmatprep.subr.mxu0 0.0
        %499 = vmatpush2.xpose.msra.mxu0 0.0
        %500 = vmatprep.subr.mxu0 0.0
        %501 = vmatpush2.xpose.msra.mxu0 0.0
        %502 = vmatprep.subr.mxu0 0.0
        %503 = vmatpush2.xpose.msra.mxu0 0.0
        %v504 = vand.u32 %v259, 4294901760
        %v505 = vsub.f32 %v259, %v504
        %506 = vmatprep.mubr.f32.mxu0 %v505
        %v507 = vand.u32 %v255, 4294901760
        %v508 = vsub.f32 %v255, %v507
        %509 = vmatmul.mubr.f32.gmra.mxu0 %v508
        %v510 = vpop.f32.mrf.mxu0
        %v511 = vadd.f32 %v433, %v510
        %v512 = vpop.f32.mrf.mxu0
        %513 = vdwg.mxu0
        %514 = vmatprep.subr.mxu0 0.0
        %515 = vmatpush1.xpose.msra.mxu0 0.0
        %516 = vmatprep.subr.mxu0 0.0
        %517 = vmatpush1.xpose.msra.mxu0 0.0
        %518 = vmatprep.subr.mxu0 0.0
        %519 = vmatpush1.xpose.msra.mxu0 0.0
        %520 = vmatprep.subr.mxu0 0.0
        %521 = vmatpush1.xpose.msra.mxu0 0.0
        %522 = vmatprep.subr.mxu0 0.0
        %523 = vmatpush1.xpose.msra.mxu0 0.0
        %524 = vmatprep.subr.mxu0 0.0
        %525 = vmatpush1.xpose.msra.mxu0 0.0
        %526 = vmatprep.subr.mxu0 0.0
        %527 = vmatpush1.xpose.msra.mxu0 0.0
        %528 = vmatprep.subr.mxu0 0.0
        %529 = vmatpush1.xpose.msra.mxu0 0.0
        %530 = vmatprep.subr.mxu0 0.0
        %531 = vmatpush1.xpose.msra.mxu0 0.0
        %532 = vmatprep.subr.mxu0 0.0
        %533 = vmatpush1.xpose.msra.mxu0 0.0
        %534 = vmatprep.subr.mxu0 0.0
        %535 = vmatpush1.xpose.msra.mxu0 0.0
        %536 = vmatprep.subr.mxu0 0.0
        %537 = vmatpush1.xpose.msra.mxu0 0.0
        %538 = vmatprep.subr.mxu0 0.0
        %539 = vmatpush1.xpose.msra.mxu0 0.0
        %540 = vmatprep.subr.mxu0 0.0
        %541 = vmatpush1.xpose.msra.mxu0 0.0
        %542 = vmatprep.subr.mxu0 0.0
        %543 = vmatpush1.xpose.msra.mxu0 0.0
        %v544 = vand.u32 %v269, 4294901760
        %545 = vmatprep.subr.mxu0 %v544
        %v546 = vand.u32 %v268, 4294901760
        %547 = vmatpush1.xpose.msra.mxu0 %v546
        %548 = vmatprep.subr.mxu0 0.0
        %549 = vmatpush2.xpose.msra.mxu0 0.0
        %550 = vmatprep.subr.mxu0 0.0
        %551 = vmatpush2.xpose.msra.mxu0 0.0
        %552 = vmatprep.subr.mxu0 0.0
        %553 = vmatpush2.xpose.msra.mxu0 0.0
        %554 = vmatprep.subr.mxu0 0.0
        %555 = vmatpush2.xpose.msra.mxu0 0.0
        %556 = vmatprep.subr.mxu0 0.0
        %557 = vmatpush2.xpose.msra.mxu0 0.0
        %558 = vmatprep.subr.mxu0 0.0
        %559 = vmatpush2.xpose.msra.mxu0 0.0
        %560 = vmatprep.subr.mxu0 0.0
        %561 = vmatpush2.xpose.msra.mxu0 0.0
        %562 = vmatprep.subr.mxu0 0.0
        %563 = vmatpush2.xpose.msra.mxu0 0.0
        %564 = vmatprep.subr.mxu0 0.0
        %565 = vmatpush2.xpose.msra.mxu0 0.0
        %566 = vmatprep.subr.mxu0 0.0
        %567 = vmatpush2.xpose.msra.mxu0 0.0
        %568 = vmatprep.subr.mxu0 0.0
        %569 = vmatpush2.xpose.msra.mxu0 0.0
        %570 = vmatprep.subr.mxu0 0.0
        %571 = vmatpush2.xpose.msra.mxu0 0.0
        %572 = vmatprep.subr.mxu0 0.0
        %573 = vmatpush2.xpose.msra.mxu0 0.0
        %574 = vmatprep.subr.mxu0 0.0
        %575 = vmatpush2.xpose.msra.mxu0 0.0
        %576 = vmatprep.subr.mxu0 0.0
        %577 = vmatpush2.xpose.msra.mxu0 0.0
        %578 = vmatprep.subr.mxu0 0.0
        %579 = vmatpush2.xpose.msra.mxu0 0.0
        %v580 = vand.u32 %v259, 4294901760
        %v581 = vsub.f32 %v259, %v580
        %v582 = vand.u32 %v581, 4294901760
        %583 = vmatprep.mubr.f32.mxu0 %v582
        %v584 = vand.u32 %v255, 4294901760
        %v585 = vsub.f32 %v255, %v584
        %v586 = vand.u32 %v585, 4294901760
        %587 = vmatmul.mubr.f32.gmra.mxu0 %v586
        %v588 = vpop.f32.mrf.mxu0
        %v589 = vadd.f32 %v511, %v588
        %v590 = vpop.f32.mrf.mxu0
        %591 = vdwg.mxu0
        %592 = vmatprep.subr.mxu0 0.0
        %593 = vmatpush1.xpose.msra.mxu0 0.0
        %594 = vmatprep.subr.mxu0 0.0
        %595 = vmatpush1.xpose.msra.mxu0 0.0
        %596 = vmatprep.subr.mxu0 0.0
        %597 = vmatpush1.xpose.msra.mxu0 0.0
        %598 = vmatprep.subr.mxu0 0.0
        %599 = vmatpush1.xpose.msra.mxu0 0.0
        %600 = vmatprep.subr.mxu0 0.0
        %601 = vmatpush1.xpose.msra.mxu0 0.0
        %602 = vmatprep.subr.mxu0 0.0
        %603 = vmatpush1.xpose.msra.mxu0 0.0
        %604 = vmatprep.subr.mxu0 0.0
        %605 = vmatpush1.xpose.msra.mxu0 0.0
        %606 = vmatprep.subr.mxu0 0.0
        %607 = vmatpush1.xpose.msra.mxu0 0.0
        %608 = vmatprep.subr.mxu0 0.0
        %609 = vmatpush1.xpose.msra.mxu0 0.0
        %610 = vmatprep.subr.mxu0 0.0
        %611 = vmatpush1.xpose.msra.mxu0 0.0
        %612 = vmatprep.subr.mxu0 0.0
        %613 = vmatpush1.xpose.msra.mxu0 0.0
        %614 = vmatprep.subr.mxu0 0.0
        %615 = vmatpush1.xpose.msra.mxu0 0.0
        %616 = vmatprep.subr.mxu0 0.0
        %617 = vmatpush1.xpose.msra.mxu0 0.0
        %618 = vmatprep.subr.mxu0 0.0
        %619 = vmatpush1.xpose.msra.mxu0 0.0
        %620 = vmatprep.subr.mxu0 0.0
        %621 = vmatpush1.xpose.msra.mxu0 0.0
        %v622 = vand.u32 %v269, 4294901760
        %v623 = vsub.f32 %v269, %v622
        %v624 = vand.u32 %v623, 4294901760
        %625 = vmatprep.subr.mxu0 %v624
        %v626 = vand.u32 %v268, 4294901760
        %v627 = vsub.f32 %v268, %v626
        %v628 = vand.u32 %v627, 4294901760
        %629 = vmatpush1.xpose.msra.mxu0 %v628
        %630 = vmatprep.subr.mxu0 0.0
        %631 = vmatpush2.xpose.msra.mxu0 0.0
        %632 = vmatprep.subr.mxu0 0.0
        %633 = vmatpush2.xpose.msra.mxu0 0.0
        %634 = vmatprep.subr.mxu0 0.0
        %635 = vmatpush2.xpose.msra.mxu0 0.0
        %636 = vmatprep.subr.mxu0 0.0
        %637 = vmatpush2.xpose.msra.mxu0 0.0
        %638 = vmatprep.subr.mxu0 0.0
        %639 = vmatpush2.xpose.msra.mxu0 0.0
        %640 = vmatprep.subr.mxu0 0.0
        %641 = vmatpush2.xpose.msra.mxu0 0.0
        %642 = vmatprep.subr.mxu0 0.0
        %643 = vmatpush2.xpose.msra.mxu0 0.0
        %644 = vmatprep.subr.mxu0 0.0
        %645 = vmatpush2.xpose.msra.mxu0 0.0
        %646 = vmatprep.subr.mxu0 0.0
        %647 = vmatpush2.xpose.msra.mxu0 0.0
        %648 = vmatprep.subr.mxu0 0.0
        %649 = vmatpush2.xpose.msra.mxu0 0.0
        %650 = vmatprep.subr.mxu0 0.0
        %651 = vmatpush2.xpose.msra.mxu0 0.0
        %652 = vmatprep.subr.mxu0 0.0
        %653 = vmatpush2.xpose.msra.mxu0 0.0
        %654 = vmatprep.subr.mxu0 0.0
        %655 = vmatpush2.xpose.msra.mxu0 0.0
        %656 = vmatprep.subr.mxu0 0.0
        %657 = vmatpush2.xpose.msra.mxu0 0.0
        %658 = vmatprep.subr.mxu0 0.0
        %659 = vmatpush2.xpose.msra.mxu0 0.0
        %660 = vmatprep.subr.mxu0 0.0
        %661 = vmatpush2.xpose.msra.mxu0 0.0
        %v662 = vand.u32 %v259, 4294901760
        %663 = vmatprep.mubr.f32.mxu0 %v662
        %v664 = vand.u32 %v255, 4294901760
        %665 = vmatmul.mubr.f32.gmra.mxu0 %v664
        %v666 = vpop.f32.mrf.mxu0
        %v667 = vadd.f32 %v589, %v666
        %v668 = vpop.f32.mrf.mxu0
        %669 = vdwg.mxu0
        %670 = vmatprep.subr.mxu0 0.0
        %671 = vmatpush1.xpose.msra.mxu0 0.0
        %672 = vmatprep.subr.mxu0 0.0
        %673 = vmatpush1.xpose.msra.mxu0 0.0
        %674 = vmatprep.subr.mxu0 0.0
        %675 = vmatpush1.xpose.msra.mxu0 0.0
        %676 = vmatprep.subr.mxu0 0.0
        %677 = vmatpush1.xpose.msra.mxu0 0.0
        %678 = vmatprep.subr.mxu0 0.0
        %679 = vmatpush1.xpose.msra.mxu0 0.0
        %680 = vmatprep.subr.mxu0 0.0
        %681 = vmatpush1.xpose.msra.mxu0 0.0
        %682 = vmatprep.subr.mxu0 0.0
        %683 = vmatpush1.xpose.msra.mxu0 0.0
        %684 = vmatprep.subr.mxu0 0.0
        %685 = vmatpush1.xpose.msra.mxu0 0.0
        %686 = vmatprep.subr.mxu0 0.0
        %687 = vmatpush1.xpose.msra.mxu0 0.0
        %688 = vmatprep.subr.mxu0 0.0
        %689 = vmatpush1.xpose.msra.mxu0 0.0
        %690 = vmatprep.subr.mxu0 0.0
        %691 = vmatpush1.xpose.msra.mxu0 0.0
        %692 = vmatprep.subr.mxu0 0.0
        %693 = vmatpush1.xpose.msra.mxu0 0.0
        %694 = vmatprep.subr.mxu0 0.0
        %695 = vmatpush1.xpose.msra.mxu0 0.0
        %696 = vmatprep.subr.mxu0 0.0
        %697 = vmatpush1.xpose.msra.mxu0 0.0
        %698 = vmatprep.subr.mxu0 0.0
        %699 = vmatpush1.xpose.msra.mxu0 0.0
        %v700 = vand.u32 %v269, 4294901760
        %701 = vmatprep.subr.mxu0 %v700
        %v702 = vand.u32 %v268, 4294901760
        %703 = vmatpush1.xpose.msra.mxu0 %v702
        %704 = vmatprep.subr.mxu0 0.0
        %705 = vmatpush2.xpose.msra.mxu0 0.0
        %706 = vmatprep.subr.mxu0 0.0
        %707 = vmatpush2.xpose.msra.mxu0 0.0
        %708 = vmatprep.subr.mxu0 0.0
        %709 = vmatpush2.xpose.msra.mxu0 0.0
        %710 = vmatprep.subr.mxu0 0.0
        %711 = vmatpush2.xpose.msra.mxu0 0.0
        %712 = vmatprep.subr.mxu0 0.0
        %713 = vmatpush2.xpose.msra.mxu0 0.0
        %714 = vmatprep.subr.mxu0 0.0
        %715 = vmatpush2.xpose.msra.mxu0 0.0
        %716 = vmatprep.subr.mxu0 0.0
        %717 = vmatpush2.xpose.msra.mxu0 0.0
        %718 = vmatprep.subr.mxu0 0.0
        %719 = vmatpush2.xpose.msra.mxu0 0.0
        %720 = vmatprep.subr.mxu0 0.0
        %721 = vmatpush2.xpose.msra.mxu0 0.0
        %722 = vmatprep.subr.mxu0 0.0
        %723 = vmatpush2.xpose.msra.mxu0 0.0
        %724 = vmatprep.subr.mxu0 0.0
        %725 = vmatpush2.xpose.msra.mxu0 0.0
        %726 = vmatprep.subr.mxu0 0.0
        %727 = vmatpush2.xpose.msra.mxu0 0.0
        %728 = vmatprep.subr.mxu0 0.0
        %729 = vmatpush2.xpose.msra.mxu0 0.0
        %730 = vmatprep.subr.mxu0 0.0
        %731 = vmatpush2.xpose.msra.mxu0 0.0
        %732 = vmatprep.subr.mxu0 0.0
        %733 = vmatpush2.xpose.msra.mxu0 0.0
        %734 = vmatprep.subr.mxu0 0.0
        %735 = vmatpush2.xpose.msra.mxu0 0.0
        %v736 = vand.u32 %v259, 4294901760
        %737 = vmatprep.mubr.f32.mxu0 %v736
        %v738 = vand.u32 %v255, 4294901760
        %739 = vmatmul.mubr.f32.gmra.mxu0 %v738
        %v740 = vpop.f32.mrf.mxu0
        %v741 = vadd.f32 %v667, %v740
        %v742 = vpop.f32.mrf.mxu0
        %743 = vdwg.mxu0
        %v744 = vmul.f32 %v255, %v255
        %v746 = vcombine.high %v744, %v744
        %748 = vmatprep.subr.mxu0 0.0
        %749 = vmatpush1.xpose.msra.mxu0 0.0
        %750 = vmatprep.subr.mxu0 0.0
        %751 = vmatpush1.xpose.msra.mxu0 0.0
        %752 = vmatprep.subr.mxu0 0.0
        %753 = vmatpush1.xpose.msra.mxu0 0.0
        %754 = vmatprep.subr.mxu0 0.0
        %755 = vmatpush1.xpose.msra.mxu0 0.0
        %756 = vmatprep.subr.mxu0 0.0
        %757 = vmatpush1.xpose.msra.mxu0 0.0
        %758 = vmatprep.subr.mxu0 0.0
        %759 = vmatpush1.xpose.msra.mxu0 0.0
        %760 = vmatprep.subr.mxu0 0.0
        %761 = vmatpush1.xpose.msra.mxu0 0.0
        %762 = vmatprep.subr.mxu0 0.0
        %763 = vmatpush1.xpose.msra.mxu0 0.0
        %764 = vmatprep.subr.mxu0 0.0
        %765 = vmatpush1.xpose.msra.mxu0 0.0
        %766 = vmatprep.subr.mxu0 0.0
        %767 = vmatpush1.xpose.msra.mxu0 0.0
        %768 = vmatprep.subr.mxu0 0.0
        %769 = vmatpush1.xpose.msra.mxu0 0.0
        %770 = vmatprep.subr.mxu0 0.0
        %771 = vmatpush1.xpose.msra.mxu0 0.0
        %772 = vmatprep.subr.mxu0 0.0
        %773 = vmatpush1.xpose.msra.mxu0 0.0
        %774 = vmatprep.subr.mxu0 0.0
        %775 = vmatpush1.xpose.msra.mxu0 0.0
        %776 = vmatprep.subr.mxu0 0.0
        %777 = vmatpush1.xpose.msra.mxu0 0.0
        %v778 = vand.u32 %v269, 4294901760
        %779 = vmatprep.subr.mxu0 %v778
        %v780 = vand.u32 %v268, 4294901760
        %781 = vmatpush1.xpose.msra.mxu0 %v780
        %782 = vmatprep.subr.mxu0 0.0
        %783 = vmatpush2.xpose.msra.mxu0 0.0
        %784 = vmatprep.subr.mxu0 0.0
        %785 = vmatpush2.xpose.msra.mxu0 0.0
        %786 = vmatprep.subr.mxu0 0.0
        %787 = vmatpush2.xpose.msra.mxu0 0.0
        %788 = vmatprep.subr.mxu0 0.0
        %789 = vmatpush2.xpose.msra.mxu0 0.0
        %790 = vmatprep.subr.mxu0 0.0
        %791 = vmatpush2.xpose.msra.mxu0 0.0
        %792 = vmatprep.subr.mxu0 0.0
        %793 = vmatpush2.xpose.msra.mxu0 0.0
        %794 = vmatprep.subr.mxu0 0.0
        %795 = vmatpush2.xpose.msra.mxu0 0.0
        %796 = vmatprep.subr.mxu0 0.0
        %797 = vmatpush2.xpose.msra.mxu0 0.0
        %798 = vmatprep.subr.mxu0 0.0
        %799 = vmatpush2.xpose.msra.mxu0 0.0
        %800 = vmatprep.subr.mxu0 0.0
        %801 = vmatpush2.xpose.msra.mxu0 0.0
        %802 = vmatprep.subr.mxu0 0.0
        %803 = vmatpush2.xpose.msra.mxu0 0.0
        %804 = vmatprep.subr.mxu0 0.0
        %805 = vmatpush2.xpose.msra.mxu0 0.0
        %806 = vmatprep.subr.mxu0 0.0
        %807 = vmatpush2.xpose.msra.mxu0 0.0
        %808 = vmatprep.subr.mxu0 0.0
        %809 = vmatpush2.xpose.msra.mxu0 0.0
        %810 = vmatprep.subr.mxu0 0.0
        %811 = vmatpush2.xpose.msra.mxu0 0.0
        %812 = vmatprep.subr.mxu0 0.0
        %813 = vmatpush2.xpose.msra.mxu0 0.0
        %v814 = vand.u32 %v746, 4294901760
        %v815 = vsub.f32 %v746, %v814
        %v816 = vand.u32 %v815, 4294901760
        %v817 = vsub.f32 %v815, %v816
        %v818 = vand.u32 %v817, 4294901760
        %819 = vmatprep.mubr.f32.mxu0 %v818
        %v820 = vand.u32 %v744, 4294901760
        %v821 = vsub.f32 %v744, %v820
        %v822 = vand.u32 %v821, 4294901760
        %v823 = vsub.f32 %v821, %v822
        %v824 = vand.u32 %v823, 4294901760
        %825 = vmatmul.mubr.f32.gmra.mxu0 %v824
        %v826 = vpop.f32.mrf.mxu0
        %v827 = vadd.f32 0.0, %v826
        %v828 = vpop.f32.mrf.mxu0
        %829 = vdwg.mxu0
        %830 = vmatprep.subr.mxu0 0.0
        %831 = vmatpush1.xpose.msra.mxu0 0.0
        %832 = vmatprep.subr.mxu0 0.0
        %833 = vmatpush1.xpose.msra.mxu0 0.0
        %834 = vmatprep.subr.mxu0 0.0
        %835 = vmatpush1.xpose.msra.mxu0 0.0
        %836 = vmatprep.subr.mxu0 0.0
        %837 = vmatpush1.xpose.msra.mxu0 0.0
        %838 = vmatprep.subr.mxu0 0.0
        %839 = vmatpush1.xpose.msra.mxu0 0.0
        %840 = vmatprep.subr.mxu0 0.0
        %841 = vmatpush1.xpose.msra.mxu0 0.0
        %842 = vmatprep.subr.mxu0 0.0
        %843 = vmatpush1.xpose.msra.mxu0 0.0
        %844 = vmatprep.subr.mxu0 0.0
        %845 = vmatpush1.xpose.msra.mxu0 0.0
        %846 = vmatprep.subr.mxu0 0.0
        %847 = vmatpush1.xpose.msra.mxu0 0.0
        %848 = vmatprep.subr.mxu0 0.0
        %849 = vmatpush1.xpose.msra.mxu0 0.0
        %850 = vmatprep.subr.mxu0 0.0
        %851 = vmatpush1.xpose.msra.mxu0 0.0
        %852 = vmatprep.subr.mxu0 0.0
        %853 = vmatpush1.xpose.msra.mxu0 0.0
        %854 = vmatprep.subr.mxu0 0.0
        %855 = vmatpush1.xpose.msra.mxu0 0.0
        %856 = vmatprep.subr.mxu0 0.0
        %857 = vmatpush1.xpose.msra.mxu0 0.0
        %858 = vmatprep.subr.mxu0 0.0
        %859 = vmatpush1.xpose.msra.mxu0 0.0
        %v860 = vand.u32 %v269, 4294901760
        %v861 = vsub.f32 %v269, %v860
        %v862 = vand.u32 %v861, 4294901760
        %v863 = vsub.f32 %v861, %v862
        %v864 = vand.u32 %v863, 4294901760
        %865 = vmatprep.subr.mxu0 %v864
        %v866 = vand.u32 %v268, 4294901760
        %v867 = vsub.f32 %v268, %v866
        %v868 = vand.u32 %v867, 4294901760
        %v869 = vsub.f32 %v867, %v868
        %v870 = vand.u32 %v869, 4294901760
        %871 = vmatpush1.xpose.msra.mxu0 %v870
        %872 = vmatprep.subr.mxu0 0.0
        %873 = vmatpush2.xpose.msra.mxu0 0.0
        %874 = vmatprep.subr.mxu0 0.0
        %875 = vmatpush2.xpose.msra.mxu0 0.0
        %876 = vmatprep.subr.mxu0 0.0
        %877 = vmatpush2.xpose.msra.mxu0 0.0
        %878 = vmatprep.subr.mxu0 0.0
        %879 = vmatpush2.xpose.msra.mxu0 0.0
        %880 = vmatprep.subr.mxu0 0.0
        %881 = vmatpush2.xpose.msra.mxu0 0.0
        %882 = vmatprep.subr.mxu0 0.0
        %883 = vmatpush2.xpose.msra.mxu0 0.0
        %884 = vmatprep.subr.mxu0 0.0
        %885 = vmatpush2.xpose.msra.mxu0 0.0
        %886 = vmatprep.subr.mxu0 0.0
        %887 = vmatpush2.xpose.msra.mxu0 0.0
        %888 = vmatprep.subr.mxu0 0.0
        %889 = vmatpush2.xpose.msra.mxu0 0.0
        %890 = vmatprep.subr.mxu0 0.0
        %891 = vmatpush2.xpose.msra.mxu0 0.0
        %892 = vmatprep.subr.mxu0 0.0
        %893 = vmatpush2.xpose.msra.mxu0 0.0
        %894 = vmatprep.subr.mxu0 0.0
        %895 = vmatpush2.xpose.msra.mxu0 0.0
        %896 = vmatprep.subr.mxu0 0.0
        %897 = vmatpush2.xpose.msra.mxu0 0.0
        %898 = vmatprep.subr.mxu0 0.0
        %899 = vmatpush2.xpose.msra.mxu0 0.0
        %900 = vmatprep.subr.mxu0 0.0
        %901 = vmatpush2.xpose.msra.mxu0 0.0
        %902 = vmatprep.subr.mxu0 0.0
        %903 = vmatpush2.xpose.msra.mxu0 0.0
        %v904 = vand.u32 %v746, 4294901760
        %905 = vmatprep.mubr.f32.mxu0 %v904
        %v906 = vand.u32 %v744, 4294901760
        %907 = vmatmul.mubr.f32.gmra.mxu0 %v906
        %v908 = vpop.f32.mrf.mxu0
        %v909 = vadd.f32 %v827, %v908
        %v910 = vpop.f32.mrf.mxu0
        %911 = vdwg.mxu0
        %912 = vmatprep.subr.mxu0 0.0
        %913 = vmatpush1.xpose.msra.mxu0 0.0
        %914 = vmatprep.subr.mxu0 0.0
        %915 = vmatpush1.xpose.msra.mxu0 0.0
        %916 = vmatprep.subr.mxu0 0.0
        %917 = vmatpush1.xpose.msra.mxu0 0.0
        %918 = vmatprep.subr.mxu0 0.0
        %919 = vmatpush1.xpose.msra.mxu0 0.0
        %920 = vmatprep.subr.mxu0 0.0
        %921 = vmatpush1.xpose.msra.mxu0 0.0
        %922 = vmatprep.subr.mxu0 0.0
        %923 = vmatpush1.xpose.msra.mxu0 0.0
        %924 = vmatprep.subr.mxu0 0.0
        %925 = vmatpush1.xpose.msra.mxu0 0.0
        %926 = vmatprep.subr.mxu0 0.0
        %927 = vmatpush1.xpose.msra.mxu0 0.0
        %928 = vmatprep.subr.mxu0 0.0
        %929 = vmatpush1.xpose.msra.mxu0 0.0
        %930 = vmatprep.subr.mxu0 0.0
        %931 = vmatpush1.xpose.msra.mxu0 0.0
        %932 = vmatprep.subr.mxu0 0.0
        %933 = vmatpush1.xpose.msra.mxu0 0.0
        %934 = vmatprep.subr.mxu0 0.0
        %935 = vmatpush1.xpose.msra.mxu0 0.0
        %936 = vmatprep.subr.mxu0 0.0
        %937 = vmatpush1.xpose.msra.mxu0 0.0
        %938 = vmatprep.subr.mxu0 0.0
        %939 = vmatpush1.xpose.msra.mxu0 0.0
        %940 = vmatprep.subr.mxu0 0.0
        %941 = vmatpush1.xpose.msra.mxu0 0.0
        %v942 = vand.u32 %v269, 4294901760
        %v943 = vsub.f32 %v269, %v942
        %944 = vmatprep.subr.mxu0 %v943
        %v945 = vand.u32 %v268, 4294901760
        %v946 = vsub.f32 %v268, %v945
        %947 = vmatpush1.xpose.msra.mxu0 %v946
        %948 = vmatprep.subr.mxu0 0.0
        %949 = vmatpush2.xpose.msra.mxu0 0.0
        %950 = vmatprep.subr.mxu0 0.0
        %951 = vmatpush2.xpose.msra.mxu0 0.0
        %952 = vmatprep.subr.mxu0 0.0
        %953 = vmatpush2.xpose.msra.mxu0 0.0
        %954 = vmatprep.subr.mxu0 0.0
        %955 = vmatpush2.xpose.msra.mxu0 0.0
        %956 = vmatprep.subr.mxu0 0.0
        %957 = vmatpush2.xpose.msra.mxu0 0.0
        %958 = vmatprep.subr.mxu0 0.0
        %959 = vmatpush2.xpose.msra.mxu0 0.0
        %960 = vmatprep.subr.mxu0 0.0
        %961 = vmatpush2.xpose.msra.mxu0 0.0
        %962 = vmatprep.subr.mxu0 0.0
        %963 = vmatpush2.xpose.msra.mxu0 0.0
        %964 = vmatprep.subr.mxu0 0.0
        %965 = vmatpush2.xpose.msra.mxu0 0.0
        %966 = vmatprep.subr.mxu0 0.0
        %967 = vmatpush2.xpose.msra.mxu0 0.0
        %968 = vmatprep.subr.mxu0 0.0
        %969 = vmatpush2.xpose.msra.mxu0 0.0
        %970 = vmatprep.subr.mxu0 0.0
        %971 = vmatpush2.xpose.msra.mxu0 0.0
        %972 = vmatprep.subr.mxu0 0.0
        %973 = vmatpush2.xpose.msra.mxu0 0.0
        %974 = vmatprep.subr.mxu0 0.0
        %975 = vmatpush2.xpose.msra.mxu0 0.0
        %976 = vmatprep.subr.mxu0 0.0
        %977 = vmatpush2.xpose.msra.mxu0 0.0
        %978 = vmatprep.subr.mxu0 0.0
        %979 = vmatpush2.xpose.msra.mxu0 0.0
        %v980 = vand.u32 %v746, 4294901760
        %v981 = vsub.f32 %v746, %v980
        %982 = vmatprep.mubr.f32.mxu0 %v981
        %v983 = vand.u32 %v744, 4294901760
        %v984 = vsub.f32 %v744, %v983
        %985 = vmatmul.mubr.f32.gmra.mxu0 %v984
        %v986 = vpop.f32.mrf.mxu0
        %v987 = vadd.f32 %v909, %v986
        %v988 = vpop.f32.mrf.mxu0
        %989 = vdwg.mxu0
        %990 = vmatprep.subr.mxu0 0.0
        %991 = vmatpush1.xpose.msra.mxu0 0.0
        %992 = vmatprep.subr.mxu0 0.0
        %993 = vmatpush1.xpose.msra.mxu0 0.0
        %994 = vmatprep.subr.mxu0 0.0
        %995 = vmatpush1.xpose.msra.mxu0 0.0
        %996 = vmatprep.subr.mxu0 0.0
        %997 = vmatpush1.xpose.msra.mxu0 0.0
        %998 = vmatprep.subr.mxu0 0.0
        %999 = vmatpush1.xpose.msra.mxu0 0.0
        %1000 = vmatprep.subr.mxu0 0.0
        %1001 = vmatpush1.xpose.msra.mxu0 0.0
        %1002 = vmatprep.subr.mxu0 0.0
        %1003 = vmatpush1.xpose.msra.mxu0 0.0
        %1004 = vmatprep.subr.mxu0 0.0
        %1005 = vmatpush1.xpose.msra.mxu0 0.0
        %1006 = vmatprep.subr.mxu0 0.0
        %1007 = vmatpush1.xpose.msra.mxu0 0.0
        %1008 = vmatprep.subr.mxu0 0.0
        %1009 = vmatpush1.xpose.msra.mxu0 0.0
        %1010 = vmatprep.subr.mxu0 0.0
        %1011 = vmatpush1.xpose.msra.mxu0 0.0
        %1012 = vmatprep.subr.mxu0 0.0
        %1013 = vmatpush1.xpose.msra.mxu0 0.0
        %1014 = vmatprep.subr.mxu0 0.0
        %1015 = vmatpush1.xpose.msra.mxu0 0.0
        %1016 = vmatprep.subr.mxu0 0.0
        %1017 = vmatpush1.xpose.msra.mxu0 0.0
        %1018 = vmatprep.subr.mxu0 0.0
        %1019 = vmatpush1.xpose.msra.mxu0 0.0
        %v1020 = vand.u32 %v269, 4294901760
        %1021 = vmatprep.subr.mxu0 %v1020
        %v1022 = vand.u32 %v268, 4294901760
        %1023 = vmatpush1.xpose.msra.mxu0 %v1022
        %1024 = vmatprep.subr.mxu0 0.0
        %1025 = vmatpush2.xpose.msra.mxu0 0.0
        %1026 = vmatprep.subr.mxu0 0.0
        %1027 = vmatpush2.xpose.msra.mxu0 0.0
        %1028 = vmatprep.subr.mxu0 0.0
        %1029 = vmatpush2.xpose.msra.mxu0 0.0
        %1030 = vmatprep.subr.mxu0 0.0
        %1031 = vmatpush2.xpose.msra.mxu0 0.0
        %1032 = vmatprep.subr.mxu0 0.0
        %1033 = vmatpush2.xpose.msra.mxu0 0.0
        %1034 = vmatprep.subr.mxu0 0.0
        %1035 = vmatpush2.xpose.msra.mxu0 0.0
        %1036 = vmatprep.subr.mxu0 0.0
        %1037 = vmatpush2.xpose.msra.mxu0 0.0
        %1038 = vmatprep.subr.mxu0 0.0
        %1039 = vmatpush2.xpose.msra.mxu0 0.0
        %1040 = vmatprep.subr.mxu0 0.0
        %1041 = vmatpush2.xpose.msra.mxu0 0.0
        %1042 = vmatprep.subr.mxu0 0.0
        %1043 = vmatpush2.xpose.msra.mxu0 0.0
        %1044 = vmatprep.subr.mxu0 0.0
        %1045 = vmatpush2.xpose.msra.mxu0 0.0
        %1046 = vmatprep.subr.mxu0 0.0
        %1047 = vmatpush2.xpose.msra.mxu0 0.0
        %1048 = vmatprep.subr.mxu0 0.0
        %1049 = vmatpush2.xpose.msra.mxu0 0.0
        %1050 = vmatprep.subr.mxu0 0.0
        %1051 = vmatpush2.xpose.msra.mxu0 0.0
        %1052 = vmatprep.subr.mxu0 0.0
        %1053 = vmatpush2.xpose.msra.mxu0 0.0
        %1054 = vmatprep.subr.mxu0 0.0
        %1055 = vmatpush2.xpose.msra.mxu0 0.0
        %v1056 = vand.u32 %v746, 4294901760
        %v1057 = vsub.f32 %v746, %v1056
        %v1058 = vand.u32 %v1057, 4294901760
        %1059 = vmatprep.mubr.f32.mxu0 %v1058
        %v1060 = vand.u32 %v744, 4294901760
        %v1061 = vsub.f32 %v744, %v1060
        %v1062 = vand.u32 %v1061, 4294901760
        %1063 = vmatmul.mubr.f32.gmra.mxu0 %v1062
        %v1064 = vpop.f32.mrf.mxu0
        %v1065 = vadd.f32 %v987, %v1064
        %v1066 = vpop.f32.mrf.mxu0
        %1067 = vdwg.mxu0
        %1068 = vmatprep.subr.mxu0 0.0
        %1069 = vmatpush1.xpose.msra.mxu0 0.0
        %1070 = vmatprep.subr.mxu0 0.0
        %1071 = vmatpush1.xpose.msra.mxu0 0.0
        %1072 = vmatprep.subr.mxu0 0.0
        %1073 = vmatpush1.xpose.msra.mxu0 0.0
        %1074 = vmatprep.subr.mxu0 0.0
        %1075 = vmatpush1.xpose.msra.mxu0 0.0
        %1076 = vmatprep.subr.mxu0 0.0
        %1077 = vmatpush1.xpose.msra.mxu0 0.0
        %1078 = vmatprep.subr.mxu0 0.0
        %1079 = vmatpush1.xpose.msra.mxu0 0.0
        %1080 = vmatprep.subr.mxu0 0.0
        %1081 = vmatpush1.xpose.msra.mxu0 0.0
        %1082 = vmatprep.subr.mxu0 0.0
        %1083 = vmatpush1.xpose.msra.mxu0 0.0
        %1084 = vmatprep.subr.mxu0 0.0
        %1085 = vmatpush1.xpose.msra.mxu0 0.0
        %1086 = vmatprep.subr.mxu0 0.0
        %1087 = vmatpush1.xpose.msra.mxu0 0.0
        %1088 = vmatprep.subr.mxu0 0.0
        %1089 = vmatpush1.xpose.msra.mxu0 0.0
        %1090 = vmatprep.subr.mxu0 0.0
        %1091 = vmatpush1.xpose.msra.mxu0 0.0
        %1092 = vmatprep.subr.mxu0 0.0
        %1093 = vmatpush1.xpose.msra.mxu0 0.0
        %1094 = vmatprep.subr.mxu0 0.0
        %1095 = vmatpush1.xpose.msra.mxu0 0.0
        %1096 = vmatprep.subr.mxu0 0.0
        %1097 = vmatpush1.xpose.msra.mxu0 0.0
        %v1098 = vand.u32 %v269, 4294901760
        %v1099 = vsub.f32 %v269, %v1098
        %v1100 = vand.u32 %v1099, 4294901760
        %1101 = vmatprep.subr.mxu0 %v1100
        %v1102 = vand.u32 %v268, 4294901760
        %v1103 = vsub.f32 %v268, %v1102
        %v1104 = vand.u32 %v1103, 4294901760
        %1105 = vmatpush1.xpose.msra.mxu0 %v1104
        %1106 = vmatprep.subr.mxu0 0.0
        %1107 = vmatpush2.xpose.msra.mxu0 0.0
        %1108 = vmatprep.subr.mxu0 0.0
        %1109 = vmatpush2.xpose.msra.mxu0 0.0
        %1110 = vmatprep.subr.mxu0 0.0
        %1111 = vmatpush2.xpose.msra.mxu0 0.0
        %1112 = vmatprep.subr.mxu0 0.0
        %1113 = vmatpush2.xpose.msra.mxu0 0.0
        %1114 = vmatprep.subr.mxu0 0.0
        %1115 = vmatpush2.xpose.msra.mxu0 0.0
        %1116 = vmatprep.subr.mxu0 0.0
        %1117 = vmatpush2.xpose.msra.mxu0 0.0
        %1118 = vmatprep.subr.mxu0 0.0
        %1119 = vmatpush2.xpose.msra.mxu0 0.0
        %1120 = vmatprep.subr.mxu0 0.0
        %1121 = vmatpush2.xpose.msra.mxu0 0.0
        %1122 = vmatprep.subr.mxu0 0.0
        %1123 = vmatpush2.xpose.msra.mxu0 0.0
        %1124 = vmatprep.subr.mxu0 0.0
        %1125 = vmatpush2.xpose.msra.mxu0 0.0
        %1126 = vmatprep.subr.mxu0 0.0
        %1127 = vmatpush2.xpose.msra.mxu0 0.0
        %1128 = vmatprep.subr.mxu0 0.0
        %1129 = vmatpush2.xpose.msra.mxu0 0.0
        %1130 = vmatprep.subr.mxu0 0.0
        %1131 = vmatpush2.xpose.msra.mxu0 0.0
        %1132 = vmatprep.subr.mxu0 0.0
        %1133 = vmatpush2.xpose.msra.mxu0 0.0
        %1134 = vmatprep.subr.mxu0 0.0
        %1135 = vmatpush2.xpose.msra.mxu0 0.0
        %1136 = vmatprep.subr.mxu0 0.0
        %1137 = vmatpush2.xpose.msra.mxu0 0.0
        %v1138 = vand.u32 %v746, 4294901760
        %1139 = vmatprep.mubr.f32.mxu0 %v1138
        %v1140 = vand.u32 %v744, 4294901760
        %1141 = vmatmul.mubr.f32.gmra.mxu0 %v1140
        %v1142 = vpop.f32.mrf.mxu0
        %v1143 = vadd.f32 %v1065, %v1142
        %v1144 = vpop.f32.mrf.mxu0
        %1145 = vdwg.mxu0
        %1146 = vmatprep.subr.mxu0 0.0
        %1147 = vmatpush1.xpose.msra.mxu0 0.0
        %1148 = vmatprep.subr.mxu0 0.0
        %1149 = vmatpush1.xpose.msra.mxu0 0.0
        %1150 = vmatprep.subr.mxu0 0.0
        %1151 = vmatpush1.xpose.msra.mxu0 0.0
        %1152 = vmatprep.subr.mxu0 0.0
        %1153 = vmatpush1.xpose.msra.mxu0 0.0
        %1154 = vmatprep.subr.mxu0 0.0
        %1155 = vmatpush1.xpose.msra.mxu0 0.0
        %1156 = vmatprep.subr.mxu0 0.0
        %1157 = vmatpush1.xpose.msra.mxu0 0.0
        %1158 = vmatprep.subr.mxu0 0.0
        %1159 = vmatpush1.xpose.msra.mxu0 0.0
        %1160 = vmatprep.subr.mxu0 0.0
        %1161 = vmatpush1.xpose.msra.mxu0 0.0
        %1162 = vmatprep.subr.mxu0 0.0
        %1163 = vmatpush1.xpose.msra.mxu0 0.0
        %1164 = vmatprep.subr.mxu0 0.0
        %1165 = vmatpush1.xpose.msra.mxu0 0.0
        %1166 = vmatprep.subr.mxu0 0.0
        %1167 = vmatpush1.xpose.msra.mxu0 0.0
        %1168 = vmatprep.subr.mxu0 0.0
        %1169 = vmatpush1.xpose.msra.mxu0 0.0
        %1170 = vmatprep.subr.mxu0 0.0
        %1171 = vmatpush1.xpose.msra.mxu0 0.0
        %1172 = vmatprep.subr.mxu0 0.0
        %1173 = vmatpush1.xpose.msra.mxu0 0.0
        %1174 = vmatprep.subr.mxu0 0.0
        %1175 = vmatpush1.xpose.msra.mxu0 0.0
        %v1176 = vand.u32 %v269, 4294901760
        %1177 = vmatprep.subr.mxu0 %v1176
        %v1178 = vand.u32 %v268, 4294901760
        %1179 = vmatpush1.xpose.msra.mxu0 %v1178
        %1180 = vmatprep.subr.mxu0 0.0
        %1181 = vmatpush2.xpose.msra.mxu0 0.0
        %1182 = vmatprep.subr.mxu0 0.0
        %1183 = vmatpush2.xpose.msra.mxu0 0.0
        %1184 = vmatprep.subr.mxu0 0.0
        %1185 = vmatpush2.xpose.msra.mxu0 0.0
        %1186 = vmatprep.subr.mxu0 0.0
        %1187 = vmatpush2.xpose.msra.mxu0 0.0
        %1188 = vmatprep.subr.mxu0 0.0
        %1189 = vmatpush2.xpose.msra.mxu0 0.0
        %1190 = vmatprep.subr.mxu0 0.0
        %1191 = vmatpush2.xpose.msra.mxu0 0.0
        %1192 = vmatprep.subr.mxu0 0.0
        %1193 = vmatpush2.xpose.msra.mxu0 0.0
        %1194 = vmatprep.subr.mxu0 0.0
        %1195 = vmatpush2.xpose.msra.mxu0 0.0
        %1196 = vmatprep.subr.mxu0 0.0
        %1197 = vmatpush2.xpose.msra.mxu0 0.0
        %1198 = vmatprep.subr.mxu0 0.0
        %1199 = vmatpush2.xpose.msra.mxu0 0.0
        %1200 = vmatprep.subr.mxu0 0.0
        %1201 = vmatpush2.xpose.msra.mxu0 0.0
        %1202 = vmatprep.subr.mxu0 0.0
        %1203 = vmatpush2.xpose.msra.mxu0 0.0
        %1204 = vmatprep.subr.mxu0 0.0
        %1205 = vmatpush2.xpose.msra.mxu0 0.0
        %1206 = vmatprep.subr.mxu0 0.0
        %1207 = vmatpush2.xpose.msra.mxu0 0.0
        %1208 = vmatprep.subr.mxu0 0.0
        %1209 = vmatpush2.xpose.msra.mxu0 0.0
        %1210 = vmatprep.subr.mxu0 0.0
        %1211 = vmatpush2.xpose.msra.mxu0 0.0
        %v1212 = vand.u32 %v746, 4294901760
        %1213 = vmatprep.mubr.f32.mxu0 %v1212
        %v1214 = vand.u32 %v744, 4294901760
        %1215 = vmatmul.mubr.f32.gmra.mxu0 %v1214
        %v1216 = vpop.f32.mrf.mxu0
        %v1217 = vadd.f32 %v1143, %v1216
        %v1218 = vpop.f32.mrf.mxu0
        %1219 = vdwg.mxu0
        %vm1220 = vcmask 1041408
        %v1221 = vsel %vm1220, %v268, 0.0
        %v1222 = vsel %vm1220, %v269, 0.0
        %v1223 = vadd.f32 %v1221, %v1222
        %1224 = vadd.xlane.f32.xlu0 %v1223
        %v1225 = vpop.xlane.xlu0 %1224
        %v1226 = vadd.f32 %v257, 1.0
        %v1227 = vadd.f32 %v1225, 1e-05
        %v1228 = vrcp.pop %v1227
        %v1229 = vmul.f32 1.0, %v1228
        %v1230 = vlaneseq
        %v1231 = vshrl.u32 %v1230, 7
        %v1232 = vsub.s32 0, %v1231
        %v1233 = vrot.slane %v1229, %v1232
        %v1234 = vmul.f32 %v741, %v1233
        %v1235 = vlaneseq
        %v1236 = vshrl.u32 %v1235, 7
        %v1237 = vsub.s32 1, %v1236
        %v1238 = vrot.slane %v1229, %v1237
        %v1239 = vmul.f32 %v741, %v1238
        %v1240 = vmul.f32 %v1234, 2.0
        %v1241 = vmul.f32 %v1240, %v741
        %v1242 = vsub.f32 %v1217, %v1241
        %v1243 = vmul.f32 %v1234, %v1234
        %v1244 = vlaneseq
        %v1245 = vshrl.u32 %v1244, 7
        %v1246 = vsub.s32 0, %v1245
        %v1247 = vrot.slane %v1225, %v1246
        %v1248 = vmul.f32 %v1243, %v1247
        %v1249 = vadd.f32 %v1242, %v1248
        %v1250 = vmul.f32 %v1249, %v1233
        %v1251 = vmul.f32 %v1239, 2.0
        %v1252 = vmul.f32 %v1251, %v741
        %v1253 = vsub.f32 %v1217, %v1252
        %v1254 = vmul.f32 %v1239, %v1239
        %v1255 = vlaneseq
        %v1256 = vshrl.u32 %v1255, 7
        %v1257 = vsub.s32 1, %v1256
        %v1258 = vrot.slane %v1225, %v1257
        %v1259 = vmul.f32 %v1254, %v1258
        %v1260 = vadd.f32 %v1253, %v1259
        %v1261 = vmul.f32 %v1260, %v1238
        %v1262 = vadd.f32 %v1261, 1e-05
        %v1263 = vrsqrt.pop %v1262
        %v1264 = vmul.f32 %v1262, %v1263
        %vm1265 = vcmp.eq.f32.partialorder %v1262, inf
        %v1266 = vsel %vm1265, %v1262, %v1264
        %vm1267 = vcmp.eq.f32.partialorder %v1262, 0.0
        %v1268 = vand.u32 %v1262, 2147483648
        %v1269 = vsel %vm1267, %v1268, %v1266
        %v1270 = vrsqrt.pop %v1262
        %v1271 = vadd.f32 %v1250, 1e-05
        %v1272 = vrsqrt.pop %v1271
        %1274 = vrot.lane.b32.xlu0 %v1226, 127
        %v1275 = vpop.permute.xlu0 %1274
        %v1277 = vmul.f32 %v1270, %v1275
        %v1278 = vmul.f32 %v1239, %v1277
        %1280 = vrot.lane.b32.xlu0 %v1278, 2
        %v1281 = vpop.permute.xlu0 %1280
        %v1283 = vsub.f32 %v257, %v1281
        %1285 = vrot.lane.b32.xlu0 %v1269, 127
        %v1286 = vpop.permute.xlu0 %1285
        %v1288 = vmul.f32 %v1272, %v1286
        %v1289 = vmul.f32 %v1288, %v1226
        %v1290 = vmul.f32 %v1234, %v1288
        %1292 = vrot.lane.b32.xlu0 %v1290, 1
        %v1293 = vpop.permute.xlu0 %1292
        %v1295 = vsub.f32 %v1239, %v1293
        %1296 = vrot.lane.b32.xlu0 %v1226, 1
        %v1297 = vpop.permute.xlu0 %1296
        %v1299 = vmul.f32 %v1295, %v1297
        %v1300 = vadd.f32 %v1299, %v257
        %1302 = vset.pattern.permute.xlu0 0
        %1303 = vperm.xlu0 %1302, %v1289
        %v1304 = vpop.permute.xlu0 %1303
        %v1306 = vunpack.c.l.s4 839922192
        %v1307 = vunpack.c.0.s8 %v1306
        %v1308 = vlaneseq
        %v1309 = vshrl.u32 %v1308, 7
        %v1310 = vsub.s32 %v1307, %v1309
        %v1311 = vrot.slane %v1304, %v1310
        %v1313 = vmul.f32 %v255, %v1311
        %1315 = vset.pattern.permute.xlu0 1
        %1316 = vperm.xlu0 %1315, %v1300
        %v1317 = vpop.permute.xlu0 %1316
        %v1319 = vunpack.c.l.s4 839922192
        %v1320 = vunpack.c.0.s8 %v1319
        %v1321 = vlaneseq
        %v1322 = vshrl.u32 %v1321, 7
        %v1323 = vsub.s32 %v1320, %v1322
        %v1324 = vrot.slane %v1317, %v1323
        %v1326 = vadd.f32 %v1313, %v1324
        %v1327 = vlaneseq
        %v1328 = vshrl.u32 %v1327, 7
        %v1329 = vsub.s32 0, %v1328
        %v1330 = vrot.slane %v256, %v1329
        %v1331 = vlaneseq
        %v1332 = vshrl.u32 %v1331, 7
        %v1333 = vsub.s32 2, %v1332
        %v1334 = vrot.slane %v256, %v1333
        %v1337 = vlaneseq
        %v1338 = vshrl.u32 %v1337, 7
        %v1339 = vsub.s32 0, %v1338
        %v1340 = vrot.slane %v1330, %v1339
        %v1341 = vlaneseq
        %v1342 = vshrl.u32 %v1341, 7
        %v1343 = vsub.s32 0, %v1342
        %v1344 = vrot.slane %v1334, %v1343
        %v1347 = vcombine.low %v1340, %v1344
        %v1349 = vmul.f32 %v1326, %v1347
        %1351 = vset.pattern.permute.xlu0 1
        %1352 = vperm.xlu0 %1351, %v1277
        %v1353 = vpop.permute.xlu0 %1352
        %v1355 = vunpack.c.l.s4 839922192
        %v1356 = vunpack.c.0.s8 %v1355
        %v1357 = vlaneseq
        %v1358 = vshrl.u32 %v1357, 7
        %v1359 = vsub.s32 %v1356, %v1358
        %v1360 = vrot.slane %v1353, %v1359
        %v1362 = vmul.f32 %v255, %v1360
        %1364 = vset.pattern.permute.xlu0 3
        %1365 = vperm.xlu0 %1364, %v1283
        %v1366 = vpop.permute.xlu0 %1365
        %v1368 = vunpack.c.l.s4 839922192
        %v1369 = vunpack.c.0.s8 %v1368
        %v1370 = vlaneseq
        %v1371 = vshrl.u32 %v1370, 7
        %v1372 = vsub.s32 %v1369, %v1371
        %v1373 = vrot.slane %v1366, %v1372
        %v1375 = vadd.f32 %v1362, %v1373
        %v1376 = vlaneseq
        %v1377 = vshrl.u32 %v1376, 7
        %v1378 = vsub.s32 1, %v1377
        %v1379 = vrot.slane %v256, %v1378
        %v1380 = vlaneseq
        %v1381 = vshrl.u32 %v1380, 7
        %v1382 = vsub.s32 3, %v1381
        %v1383 = vrot.slane %v256, %v1382
        %v1386 = vlaneseq
        %v1387 = vshrl.u32 %v1386, 7
        %v1388 = vsub.s32 1, %v1387
        %v1389 = vrot.slane %v1379, %v1388
        %v1390 = vlaneseq
        %v1391 = vshrl.u32 %v1390, 7
        %v1392 = vsub.s32 1, %v1391
        %v1393 = vrot.slane %v1383, %v1392
        %v1396 = vcombine.low %v1389, %v1393
        %v1398 = vmul.f32 %v1375, %v1396
        %v1399 = vadd.f32 %v1349, %v1398
        %1400 = vst [vmem:[%s254] sm:$0xff] %v1399
        %s1401 = sand.u32 %s120, 1
        %s1402 = scalar_lea.sflag [#allocation4], %s1401
        %s1403 = sand.u32 %s120, 1
        %s1404 = smul.addr %s1403, 8
        %s1405 = scalar_lea.vmem [#allocation8], %s1404
        // Predicated region
        $region45: #{tpu_custom_call.1} parent=31 // pred_check
          %p1406 = pneg %p130
        $region46: #{tpu_custom_call.1} parent=31 // pred_check_branch
          %1408 = sbr.rel (%p1406) target = $region48
        $region47: #{tpu_custom_call.1} parent=31 // pred_region
          %s1410 = ssub.s32 128, 128
          %1411 = vsyncadd %s1402, %s1410
          %s1412 = smul.addr %s28, 2
          %s1413 = smul.addr %s27, 2
          %s1414 = sadd.s32 %s1412, %s1413
          %s1415 = smul.addr %s1414, 64
          %s1416 = scalar_lea.hbm %s3, %s1415
          %s1418 = sshll.u32 %s1405, 4
          %s1419 = int_to_ptr.vmem [resolvable:$true] %s1418
          %1421 = dma.vmem_to_hbm [thread:$0]  %s1419, 128, %s1416, %s1402
        $region48: #{tpu_custom_call.1} parent=31 // pred_fallthru
          _
      $region32: #{tpu_custom_call.1} parent=5 // pred_fallthru
        _
      %p1422 = scmp.le.s32.totalorder 2, %s18
      // Predicated region
      $region49: #{tpu_custom_call.1} parent=5 // pred_check
        %p1423 = pneg %p1422
      $region50: #{tpu_custom_call.1} parent=5 // pred_check_branch
        %1425 = sbr.rel (%p1423) target = $region52
      $region51: #{tpu_custom_call.1} parent=5 // pred_region
        %s1426 = ssub.s32 %s18, 2
        // Predicated region
        $region53: #{tpu_custom_call.1} parent=51 // pred_check
          %p1427 = pneg %p136
        $region54: #{tpu_custom_call.1} parent=51 // pred_check_branch
          %1429 = sbr.rel (%p1427) target = $region56
        $region55: #{tpu_custom_call.1} parent=51 // pred_region
          %s1430 = sand.u32 %s121, 1
          %s1431 = scalar_lea.sflag [#allocation4], %s1430
          %s1432 = sand.u32 %s121, 1
          %s1433 = smul.addr %s1432, 8
          %s1434 = scalar_lea.vmem [#allocation8], %s1433
          %1435 = dma.done %s1431, 128
        $region56: #{tpu_custom_call.1} parent=51 // pred_fallthru
          _
      $region52: #{tpu_custom_call.1} parent=5 // pred_fallthru
        _
    $region6: #{tpu_custom_call.1} parent=1 // loop_footer
      %s22 = sadd.s32 1, %s18
    $region7: #{tpu_custom_call.1} parent=1 // loop_footer_branch
      %17 = sbr.rel target = $region3
    $region8: #{tpu_custom_call.1} parent=1 // loop_exit
      _
    %1436 = vsyncpa [#allocation3], 1
    %s1437 = scalar_lea.sflag [#allocation3], 1
    %1438 = vsyncpa %s1437, 1
    %1439 = vsyncpa [#allocation6], 1
    %s1440 = scalar_lea.sflag [#allocation6], 1
    %1441 = vsyncpa %s1440, 1
    %1442 = vsyncpa [#allocation4], 1
    %s1443 = scalar_lea.sflag [#allocation4], 1
    %1444 = vsyncpa %s1443, 1

</llo_original>
